<compile_context>
chip_gen: v7x
topology: tpu7x:2x2x1
jax: 0.10.0
libtpu: 0.0.40
codegen_flags: <defaults>
</compile_context>

<pallas_src>
import functools

import jax
import jax.numpy as jnp
from jax import lax
from jax.experimental import pallas as pl
from jax.experimental.pallas import tpu as pltpu


# ----------------------------------------------------------------------------
# Fused kernel
# ----------------------------------------------------------------------------

def _fused_mstcn_kernel(x_ref, w1t_ref, b1_ref, wtT_ref, bt_ref, s2_ref, h2_ref,
                        o_ref, *, dilations, K, bc, T, V, cout):
    TV = T * V
    n_dil = len(dilations)

    x = x_ref[0]            # (Cin, T*V)   lane-dense load
    w1t = w1t_ref[...]      # (C_total, Cin)    BN folded
    b1 = b1_ref[...]        # (C_total, 1)
    wtT = wtT_ref[...]      # (n_dil*K*bc, bc)  BN folded
    bt = bt_ref[...]        # (n_dil*bc, 1)
    s2 = s2_ref[...]        # (bc, 1)  post-maxpool BN scale
    h2 = h2_ref[...]        # (bc, 1)  post-maxpool BN shift

    # All six branch 1x1 convs + the residual 1x1 in one MXU matmul.
    y1 = jnp.dot(w1t, x, preferred_element_type=jnp.float32) + b1   # (C_total, TV)

    row = lax.broadcasted_iota(jnp.int32, (TV, TV), 0)
    col = lax.broadcasted_iota(jnp.int32, (TV, TV), 1)

    def shift_t(a, off):
        # result[:, t*V + v] = a[:, (t+off)*V + v], zero where t+off is out of
        # range (temporal 'same' zero padding). Implemented as a matmul against
        # a shift matrix -- MXU has plenty of slack and this avoids lane
        # shuffles / padded HBM copies.
        if off == 0:
            return a
        m = (row == col + off * V).astype(jnp.float32)               # (TV, TV)
        return jnp.dot(a, m, preferred_element_type=jnp.float32)

    outs = []
    # Dilated temporal-conv branches: 1x1+BN (in y1) -> ReLU -> temporal conv+BN.
    for i, d in enumerate(dilations):
        yb = jnp.maximum(y1[i * bc:(i + 1) * bc, :], 0.0)            # ReLU
        pad_t = (K + (K - 1) * (d - 1) - 1) // 2
        acc = jnp.zeros((bc, TV), jnp.float32)
        for j in range(K):                                           # static taps
            w_tap = wtT[(i * K + j) * bc:(i * K + j + 1) * bc, :]    # (bc_out, bc_in)
            acc = acc + jnp.dot(w_tap, shift_t(yb, j * d - pad_t),
                                preferred_element_type=jnp.float32)
        outs.append(acc + bt[i * bc:(i + 1) * bc, :])

    # MaxPool branch: 1x1+BN+ReLU -> MaxPool((3,1), stride 1, pad (1,0)) -> BN.
    # Zero boundary fill is exact here: the pooled input is post-ReLU (>= 0),
    # so an extra zero candidate never changes the window max.
    ym = jnp.maximum(y1[n_dil * bc:(n_dil + 1) * bc, :], 0.0)
    mp = jnp.maximum(jnp.maximum(shift_t(ym, -1), ym), shift_t(ym, 1))
    outs.append(mp * s2 + h2)

    # Plain 1x1 branch (conv + BN, no ReLU).
    outs.append(y1[(n_dil + 1) * bc:(n_dil + 2) * bc, :])

    branch = jnp.concatenate(outs, axis=0)                           # (Cout, TV)
    res = y1[(n_dil + 2) * bc:(n_dil + 2) * bc + cout, :]            # residual 1x1+BN
    o_ref[0] = jnp.maximum(branch + res, 0.0).astype(o_ref.dtype)    # lane-dense store


# ----------------------------------------------------------------------------
# pallas_call wrapper
# ----------------------------------------------------------------------------

_COMPILER_PARAMS = pltpu.CompilerParams(dimension_semantics=("parallel",))


def multiscale_tcn_forward(x_nchw, params, kernel_size=3, dilations=(1, 2, 3, 4)):
    N, cin, T, V = x_nchw.shape
    TV = T * V
    n_dil = len(dilations)
    bc = params["bt"].shape[0] // n_dil
    cout = params["w1t"].shape[0] - (n_dil + 2) * bc
    ctot = (n_dil + 2) * bc + cout

    # NCHW (N, C, T, V) -> (N, C, T*V): pure reshape, no transpose needed.
    x2 = x_nchw.reshape(N, cin, TV).astype(jnp.float32)

    kernel = functools.partial(
        _fused_mstcn_kernel, dilations=tuple(dilations), K=kernel_size,
        bc=bc, T=T, V=V, cout=cout)

    out = pl.pallas_call(
        kernel,
        out_shape=jax.ShapeDtypeStruct((N, cout, TV), jnp.float32),
        grid=(N,),
        in_specs=[
            pl.BlockSpec((1, cin, TV), lambda n: (n, 0, 0)),
            pl.BlockSpec((ctot, cin), lambda n: (0, 0)),
            pl.BlockSpec((ctot, 1), lambda n: (0, 0)),
            pl.BlockSpec((n_dil * kernel_size * bc, bc), lambda n: (0, 0)),
            pl.BlockSpec((n_dil * bc, 1), lambda n: (0, 0)),
            pl.BlockSpec((bc, 1), lambda n: (0, 0)),
            pl.BlockSpec((bc, 1), lambda n: (0, 0)),
        ],
        out_specs=pl.BlockSpec((1, cout, TV), lambda n: (n, 0, 0)),
        compiler_params=_COMPILER_PARAMS,
    )(x2, params["w1t"], params["b1"], params["wtT"], params["bt"],
      params["s2"], params["h2"])

    return out.reshape(N, cout, T, V)


# ----------------------------------------------------------------------------
# Parameter initialization (deterministic, synthetic) with BN folding
# ----------------------------------------------------------------------------

def _init_conv(key, cin, cout, k):
    kw, kb = jax.random.split(key)
    fan_in = cin * k
    bound = 1.0 / (fan_in ** 0.5)
    w = jax.random.uniform(kw, (k, cin, cout), jnp.float32, -bound, bound)
    b = jax.random.uniform(kb, (cout,), jnp.float32, -bound, bound)
    return w, b


def _init_bn(key, c, eps=1e-5):
    kg, kb, km, kv = jax.random.split(key, 4)
    gamma = jax.random.uniform(kg, (c,), jnp.float32, 0.5, 1.5)
    beta = jax.random.uniform(kb, (c,), jnp.float32, -0.2, 0.2)
    mean = 0.1 * jax.random.normal(km, (c,), jnp.float32)
    var = jax.random.uniform(kv, (c,), jnp.float32, 0.5, 1.5)
    scale = gamma / jnp.sqrt(var + eps)
    shift = beta - mean * scale
    return scale, shift


def init_params(key, cin, cout, kernel_size=3, dilations=(1, 2, 3, 4)):
    """Returns kernel-ready packed weights with eval-mode BN pre-folded."""
    num_branches = len(dilations) + 2
    assert cout % num_branches == 0, "# out channels should be multiples of # branches"
    bc = cout // num_branches
    keys = iter(jax.random.split(key, 64))

    w1t_rows, b1_rows = [], []        # fused 1x1 stage (all branches + residual)
    wtT_rows, bt_rows = [], []        # temporal-conv stage (dilated branches)

    for _ in dilations:
        w1, b1 = _init_conv(next(keys), cin, bc, 1)
        s1, h1 = _init_bn(next(keys), bc)
        w1t_rows.append((w1[0] * s1[None, :]).T)          # (bc, cin)
        b1_rows.append(b1 * s1 + h1)
        wt, btb = _init_conv(next(keys), bc, bc, kernel_size)   # (K, bc_in, bc_out)
        st, ht = _init_bn(next(keys), bc)
        wtf = wt * st[None, None, :]                      # fold BN into out-channels
        # per tap j we need (bc_out, bc_in) = wtf[j].T, stacked over taps
        wtT_rows.append(jnp.transpose(wtf, (0, 2, 1)).reshape(kernel_size * bc, bc))
        bt_rows.append(btb * st + ht)

    # MaxPool branch: 1x1 conv + BN (+ReLU in kernel); post-maxpool BN kept apart.
    w1, b1 = _init_conv(next(keys), cin, bc, 1)
    s1, h1 = _init_bn(next(keys), bc)
    w1t_rows.append((w1[0] * s1[None, :]).T)
    b1_rows.append(b1 * s1 + h1)
    s2, h2 = _init_bn(next(keys), bc)

    # Plain 1x1 branch: 1x1 conv + BN (no ReLU).
    w1, b1 = _init_conv(next(keys), cin, bc, 1)
    s1, h1 = _init_bn(next(keys), bc)
    w1t_rows.append((w1[0] * s1[None, :]).T)
    b1_rows.append(b1 * s1 + h1)

    # Residual: TemporalConv(cin, cout, kernel_size=1) == 1x1 conv + BN.
    wr, br = _init_conv(next(keys), cin, cout, 1)
    sr, hr = _init_bn(next(keys), cout)
    w1t_rows.append((wr[0] * sr[None, :]).T)              # (cout, cin)
    b1_rows.append(br * sr + hr)

    return dict(
        w1t=jnp.concatenate(w1t_rows, axis=0),            # (6*bc + cout, cin)
        b1=jnp.concatenate(b1_rows, axis=0)[:, None],     # (6*bc + cout, 1)
        wtT=jnp.concatenate(wtT_rows, axis=0),            # (n_dil*K*bc, bc)
        bt=jnp.concatenate(bt_rows, axis=0)[:, None],     # (n_dil*bc, 1)
        s2=s2[:, None],                                   # (bc, 1)
        h2=h2[:, None],                                   # (bc, 1)
    )


# ----------------------------------------------------------------------------
# Demo
# ----------------------------------------------------------------------------

if __name__ == "__main__":
    key = jax.random.PRNGKey(0)
    kx, kp = jax.random.split(key)

    N, Cin, T, V = 2, 8, 16, 8
    Cout = 48  # multiple of 6 branches -> branch_channels = 8 (sublane-aligned)

    x = jax.random.normal(kx, (N, Cin, T, V), jnp.float32)
    params = init_params(kp, Cin, Cout, kernel_size=3, dilations=(1, 2, 3, 4))

    out = multiscale_tcn_forward(x, params, kernel_size=3, dilations=(1, 2, 3, 4))
    out = jax.block_until_ready(out)
    assert out.shape == (N, Cout, T, V), out.shape
    assert bool(jnp.all(jnp.isfinite(out)))
    print("KERNEL_OK")
</pallas_src>

<mosaic_0001>
module attributes {stable_mosaic.version = 11 : i64} {
  func.func @_fused_mstcn_kernel(%arg0: i32, %arg1: memref<1x8x128xf32, #tpu.memory_space<vmem>>, %arg2: memref<96x8xf32, #tpu.memory_space<vmem>>, %arg3: memref<96x1xf32, #tpu.memory_space<vmem>>, %arg4: memref<96x8xf32, #tpu.memory_space<vmem>>, %arg5: memref<32x1xf32, #tpu.memory_space<vmem>>, %arg6: memref<8x1xf32, #tpu.memory_space<vmem>>, %arg7: memref<8x1xf32, #tpu.memory_space<vmem>>, %arg8: memref<1x48x128xf32, #tpu.memory_space<vmem>>) attributes {dimension_semantics = [#tpu.dimension_semantics<parallel>], iteration_bounds = array<i64: 2>, scalar_prefetch = 0 : i64, scratch_operands = 0 : i64, tpu.core_type = #tpu.core_type<tc>, window_params = [{transform_indices = @transform_0, window_bounds = array<i64: 1, 8, 128>}, {pipeline_mode = #tpu.pipeline_mode<synchronous>, transform_indices = @transform_1, window_bounds = array<i64: 96, 8>}, {pipeline_mode = #tpu.pipeline_mode<synchronous>, transform_indices = @transform_2, window_bounds = array<i64: 96, 1>}, {pipeline_mode = #tpu.pipeline_mode<synchronous>, transform_indices = @transform_3, window_bounds = array<i64: 96, 8>}, {pipeline_mode = #tpu.pipeline_mode<synchronous>, transform_indices = @transform_4, window_bounds = array<i64: 32, 1>}, {pipeline_mode = #tpu.pipeline_mode<synchronous>, transform_indices = @transform_5, window_bounds = array<i64: 8, 1>}, {pipeline_mode = #tpu.pipeline_mode<synchronous>, transform_indices = @transform_6, window_bounds = array<i64: 8, 1>}, {transform_indices = @transform_7, window_bounds = array<i64: 1, 48, 128>}]} {
    %c0 = arith.constant 0 : index
    %c0_0 = arith.constant 0 : index
    %c0_1 = arith.constant 0 : index
    %0 = vector.load %arg1[%c0, %c0_0, %c0_1] : memref<1x8x128xf32, #tpu.memory_space<vmem>>, vector<1x8x128xf32>
    %1 = vector.shape_cast %0 : vector<1x8x128xf32> to vector<8x128xf32>
    %c0_2 = arith.constant 0 : index
    %c0_3 = arith.constant 0 : index
    %2 = vector.load %arg2[%c0_2, %c0_3] : memref<96x8xf32, #tpu.memory_space<vmem>>, vector<96x8xf32>
    %c0_4 = arith.constant 0 : index
    %c0_5 = arith.constant 0 : index
    %3 = vector.load %arg3[%c0_4, %c0_5] : memref<96x1xf32, #tpu.memory_space<vmem>>, vector<96x1xf32>
    %c0_6 = arith.constant 0 : index
    %c0_7 = arith.constant 0 : index
    %4 = vector.load %arg4[%c0_6, %c0_7] : memref<96x8xf32, #tpu.memory_space<vmem>>, vector<96x8xf32>
    %c0_8 = arith.constant 0 : index
    %c0_9 = arith.constant 0 : index
    %5 = vector.load %arg5[%c0_8, %c0_9] : memref<32x1xf32, #tpu.memory_space<vmem>>, vector<32x1xf32>
    %c0_10 = arith.constant 0 : index
    %c0_11 = arith.constant 0 : index
    %6 = vector.load %arg6[%c0_10, %c0_11] : memref<8x1xf32, #tpu.memory_space<vmem>>, vector<8x1xf32>
    %c0_12 = arith.constant 0 : index
    %c0_13 = arith.constant 0 : index
    %7 = vector.load %arg7[%c0_12, %c0_13] : memref<8x1xf32, #tpu.memory_space<vmem>>, vector<8x1xf32>
    %cst = arith.constant dense<0.000000e+00> : vector<96x128xf32>
    %8 = tpu.matmul %2, %1, %cst {dimension_numbers = #tpu.dot_dimension_numbers<[1], [0], [0], [1], [0, 0, 1, 1], [], []>} : vector<96x8xf32>, vector<8x128xf32>, vector<96x128xf32> -> vector<96x128xf32>
    %9 = vector.broadcast %3 : vector<96x1xf32> to vector<96x128xf32>
    %10 = arith.addf %8, %9 : vector<96x128xf32>
    %11 = tpu.iota {dimensions = array<i32: 0>} : vector<128x128xi32>
    %12 = tpu.iota {dimensions = array<i32: 1>} : vector<128x128xi32>
    %13 = vector.extract_strided_slice %10 {offsets = [0, 0], sizes = [8, 128], strides = [1, 1]} : vector<96x128xf32> to vector<8x128xf32>
    %cst_14 = arith.constant 0.000000e+00 : f32
    %14 = vector.broadcast %cst_14 : f32 to vector<8x128xf32>
    %15 = arith.maximumf %13, %14 : vector<8x128xf32>
    %cst_15 = arith.constant 0.000000e+00 : f32
    %16 = vector.broadcast %cst_15 : f32 to vector<8x128xf32>
    %17 = vector.extract_strided_slice %4 {offsets = [0, 0], sizes = [8, 8], strides = [1, 1]} : vector<96x8xf32> to vector<8x8xf32>
    %c-8_i32 = arith.constant -8 : i32
    %18 = vector.broadcast %c-8_i32 : i32 to vector<128x128xi32>
    %19 = arith.addi %12, %18 : vector<128x128xi32>
    %20 = arith.cmpi eq, %11, %19 : vector<128x128xi32>
    %21 = arith.extui %20 : vector<128x128xi1> to vector<128x128xi32>
    %22 = arith.sitofp %21 : vector<128x128xi32> to vector<128x128xf32>
    %cst_16 = arith.constant dense<0.000000e+00> : vector<8x128xf32>
    %23 = tpu.matmul %15, %22, %cst_16 {dimension_numbers = #tpu.dot_dimension_numbers<[1], [0], [0], [1], [0, 0, 1, 1], [], []>} : vector<8x128xf32>, vector<128x128xf32>, vector<8x128xf32> -> vector<8x128xf32>
    %cst_17 = arith.constant dense<0.000000e+00> : vector<8x128xf32>
    %24 = tpu.matmul %17, %23, %cst_17 {dimension_numbers = #tpu.dot_dimension_numbers<[1], [0], [0], [1], [0, 0, 1, 1], [], []>} : vector<8x8xf32>, vector<8x128xf32>, vector<8x128xf32> -> vector<8x128xf32>
    %25 = arith.addf %16, %24 : vector<8x128xf32>
    %26 = vector.extract_strided_slice %4 {offsets = [8, 0], sizes = [8, 8], strides = [1, 1]} : vector<96x8xf32> to vector<8x8xf32>
    %cst_18 = arith.constant dense<0.000000e+00> : vector<8x128xf32>
    %27 = tpu.matmul %26, %15, %cst_18 {dimension_numbers = #tpu.dot_dimension_numbers<[1], [0], [0], [1], [0, 0, 1, 1], [], []>} : vector<8x8xf32>, vector<8x128xf32>, vector<8x128xf32> -> vector<8x128xf32>
    %28 = arith.addf %25, %27 : vector<8x128xf32>
    %29 = vector.extract_strided_slice %4 {offsets = [16, 0], sizes = [8, 8], strides = [1, 1]} : vector<96x8xf32> to vector<8x8xf32>
    %c8_i32 = arith.constant 8 : i32
    %30 = vector.broadcast %c8_i32 : i32 to vector<128x128xi32>
    %31 = arith.addi %12, %30 : vector<128x128xi32>
    %32 = arith.cmpi eq, %11, %31 : vector<128x128xi32>
    %33 = arith.extui %32 : vector<128x128xi1> to vector<128x128xi32>
    %34 = arith.sitofp %33 : vector<128x128xi32> to vector<128x128xf32>
    %cst_19 = arith.constant dense<0.000000e+00> : vector<8x128xf32>
    %35 = tpu.matmul %15, %34, %cst_19 {dimension_numbers = #tpu.dot_dimension_numbers<[1], [0], [0], [1], [0, 0, 1, 1], [], []>} : vector<8x128xf32>, vector<128x128xf32>, vector<8x128xf32> -> vector<8x128xf32>
    %cst_20 = arith.constant dense<0.000000e+00> : vector<8x128xf32>
    %36 = tpu.matmul %29, %35, %cst_20 {dimension_numbers = #tpu.dot_dimension_numbers<[1], [0], [0], [1], [0, 0, 1, 1], [], []>} : vector<8x8xf32>, vector<8x128xf32>, vector<8x128xf32> -> vector<8x128xf32>
    %37 = arith.addf %28, %36 : vector<8x128xf32>
    %38 = vector.extract_strided_slice %5 {offsets = [0, 0], sizes = [8, 1], strides = [1, 1]} : vector<32x1xf32> to vector<8x1xf32>
    %39 = vector.broadcast %38 : vector<8x1xf32> to vector<8x128xf32>
    %40 = arith.addf %37, %39 : vector<8x128xf32>
    %41 = vector.extract_strided_slice %10 {offsets = [8, 0], sizes = [8, 128], strides = [1, 1]} : vector<96x128xf32> to vector<8x128xf32>
    %cst_21 = arith.constant 0.000000e+00 : f32
    %42 = vector.broadcast %cst_21 : f32 to vector<8x128xf32>
    %43 = arith.maximumf %41, %42 : vector<8x128xf32>
    %cst_22 = arith.constant 0.000000e+00 : f32
    %44 = vector.broadcast %cst_22 : f32 to vector<8x128xf32>
    %45 = vector.extract_strided_slice %4 {offsets = [24, 0], sizes = [8, 8], strides = [1, 1]} : vector<96x8xf32> to vector<8x8xf32>
    %c-16_i32 = arith.constant -16 : i32
    %46 = vector.broadcast %c-16_i32 : i32 to vector<128x128xi32>
    %47 = arith.addi %12, %46 : vector<128x128xi32>
    %48 = arith.cmpi eq, %11, %47 : vector<128x128xi32>
    %49 = arith.extui %48 : vector<128x128xi1> to vector<128x128xi32>
    %50 = arith.sitofp %49 : vector<128x128xi32> to vector<128x128xf32>
    %cst_23 = arith.constant dense<0.000000e+00> : vector<8x128xf32>
    %51 = tpu.matmul %43, %50, %cst_23 {dimension_numbers = #tpu.dot_dimension_numbers<[1], [0], [0], [1], [0, 0, 1, 1], [], []>} : vector<8x128xf32>, vector<128x128xf32>, vector<8x128xf32> -> vector<8x128xf32>
    %cst_24 = arith.constant dense<0.000000e+00> : vector<8x128xf32>
    %52 = tpu.matmul %45, %51, %cst_24 {dimension_numbers = #tpu.dot_dimension_numbers<[1], [0], [0], [1], [0, 0, 1, 1], [], []>} : vector<8x8xf32>, vector<8x128xf32>, vector<8x128xf32> -> vector<8x128xf32>
    %53 = arith.addf %44, %52 : vector<8x128xf32>
    %54 = vector.extract_strided_slice %4 {offsets = [32, 0], sizes = [8, 8], strides = [1, 1]} : vector<96x8xf32> to vector<8x8xf32>
    %cst_25 = arith.constant dense<0.000000e+00> : vector<8x128xf32>
    %55 = tpu.matmul %54, %43, %cst_25 {dimension_numbers = #tpu.dot_dimension_numbers<[1], [0], [0], [1], [0, 0, 1, 1], [], []>} : vector<8x8xf32>, vector<8x128xf32>, vector<8x128xf32> -> vector<8x128xf32>
    %56 = arith.addf %53, %55 : vector<8x128xf32>
    %57 = vector.extract_strided_slice %4 {offsets = [40, 0], sizes = [8, 8], strides = [1, 1]} : vector<96x8xf32> to vector<8x8xf32>
    %c16_i32 = arith.constant 16 : i32
    %58 = vector.broadcast %c16_i32 : i32 to vector<128x128xi32>
    %59 = arith.addi %12, %58 : vector<128x128xi32>
    %60 = arith.cmpi eq, %11, %59 : vector<128x128xi32>
    %61 = arith.extui %60 : vector<128x128xi1> to vector<128x128xi32>
    %62 = arith.sitofp %61 : vector<128x128xi32> to vector<128x128xf32>
    %cst_26 = arith.constant dense<0.000000e+00> : vector<8x128xf32>
    %63 = tpu.matmul %43, %62, %cst_26 {dimension_numbers = #tpu.dot_dimension_numbers<[1], [0], [0], [1], [0, 0, 1, 1], [], []>} : vector<8x128xf32>, vector<128x128xf32>, vector<8x128xf32> -> vector<8x128xf32>
    %cst_27 = arith.constant dense<0.000000e+00> : vector<8x128xf32>
    %64 = tpu.matmul %57, %63, %cst_27 {dimension_numbers = #tpu.dot_dimension_numbers<[1], [0], [0], [1], [0, 0, 1, 1], [], []>} : vector<8x8xf32>, vector<8x128xf32>, vector<8x128xf32> -> vector<8x128xf32>
    %65 = arith.addf %56, %64 : vector<8x128xf32>
    %66 = vector.extract_strided_slice %5 {offsets = [8, 0], sizes = [8, 1], strides = [1, 1]} : vector<32x1xf32> to vector<8x1xf32>
    %67 = vector.broadcast %66 : vector<8x1xf32> to vector<8x128xf32>
    %68 = arith.addf %65, %67 : vector<8x128xf32>
    %69 = vector.extract_strided_slice %10 {offsets = [16, 0], sizes = [8, 128], strides = [1, 1]} : vector<96x128xf32> to vector<8x128xf32>
    %cst_28 = arith.constant 0.000000e+00 : f32
    %70 = vector.broadcast %cst_28 : f32 to vector<8x128xf32>
    %71 = arith.maximumf %69, %70 : vector<8x128xf32>
    %cst_29 = arith.constant 0.000000e+00 : f32
    %72 = vector.broadcast %cst_29 : f32 to vector<8x128xf32>
    %73 = vector.extract_strided_slice %4 {offsets = [48, 0], sizes = [8, 8], strides = [1, 1]} : vector<96x8xf32> to vector<8x8xf32>
    %c-24_i32 = arith.constant -24 : i32
    %74 = vector.broadcast %c-24_i32 : i32 to vector<128x128xi32>
    %75 = arith.addi %12, %74 : vector<128x128xi32>
    %76 = arith.cmpi eq, %11, %75 : vector<128x128xi32>
    %77 = arith.extui %76 : vector<128x128xi1> to vector<128x128xi32>
    %78 = arith.sitofp %77 : vector<128x128xi32> to vector<128x128xf32>
    %cst_30 = arith.constant dense<0.000000e+00> : vector<8x128xf32>
    %79 = tpu.matmul %71, %78, %cst_30 {dimension_numbers = #tpu.dot_dimension_numbers<[1], [0], [0], [1], [0, 0, 1, 1], [], []>} : vector<8x128xf32>, vector<128x128xf32>, vector<8x128xf32> -> vector<8x128xf32>
    %cst_31 = arith.constant dense<0.000000e+00> : vector<8x128xf32>
    %80 = tpu.matmul %73, %79, %cst_31 {dimension_numbers = #tpu.dot_dimension_numbers<[1], [0], [0], [1], [0, 0, 1, 1], [], []>} : vector<8x8xf32>, vector<8x128xf32>, vector<8x128xf32> -> vector<8x128xf32>
    %81 = arith.addf %72, %80 : vector<8x128xf32>
    %82 = vector.extract_strided_slice %4 {offsets = [56, 0], sizes = [8, 8], strides = [1, 1]} : vector<96x8xf32> to vector<8x8xf32>
    %cst_32 = arith.constant dense<0.000000e+00> : vector<8x128xf32>
    %83 = tpu.matmul %82, %71, %cst_32 {dimension_numbers = #tpu.dot_dimension_numbers<[1], [0], [0], [1], [0, 0, 1, 1], [], []>} : vector<8x8xf32>, vector<8x128xf32>, vector<8x128xf32> -> vector<8x128xf32>
    %84 = arith.addf %81, %83 : vector<8x128xf32>
    %85 = vector.extract_strided_slice %4 {offsets = [64, 0], sizes = [8, 8], strides = [1, 1]} : vector<96x8xf32> to vector<8x8xf32>
    %c24_i32 = arith.constant 24 : i32
    %86 = vector.broadcast %c24_i32 : i32 to vector<128x128xi32>
    %87 = arith.addi %12, %86 : vector<128x128xi32>
    %88 = arith.cmpi eq, %11, %87 : vector<128x128xi32>
    %89 = arith.extui %88 : vector<128x128xi1> to vector<128x128xi32>
    %90 = arith.sitofp %89 : vector<128x128xi32> to vector<128x128xf32>
    %cst_33 = arith.constant dense<0.000000e+00> : vector<8x128xf32>
    %91 = tpu.matmul %71, %90, %cst_33 {dimension_numbers = #tpu.dot_dimension_numbers<[1], [0], [0], [1], [0, 0, 1, 1], [], []>} : vector<8x128xf32>, vector<128x128xf32>, vector<8x128xf32> -> vector<8x128xf32>
    %cst_34 = arith.constant dense<0.000000e+00> : vector<8x128xf32>
    %92 = tpu.matmul %85, %91, %cst_34 {dimension_numbers = #tpu.dot_dimension_numbers<[1], [0], [0], [1], [0, 0, 1, 1], [], []>} : vector<8x8xf32>, vector<8x128xf32>, vector<8x128xf32> -> vector<8x128xf32>
    %93 = arith.addf %84, %92 : vector<8x128xf32>
    %94 = vector.extract_strided_slice %5 {offsets = [16, 0], sizes = [8, 1], strides = [1, 1]} : vector<32x1xf32> to vector<8x1xf32>
    %95 = vector.broadcast %94 : vector<8x1xf32> to vector<8x128xf32>
    %96 = arith.addf %93, %95 : vector<8x128xf32>
    %97 = vector.extract_strided_slice %10 {offsets = [24, 0], sizes = [8, 128], strides = [1, 1]} : vector<96x128xf32> to vector<8x128xf32>
    %cst_35 = arith.constant 0.000000e+00 : f32
    %98 = vector.broadcast %cst_35 : f32 to vector<8x128xf32>
    %99 = arith.maximumf %97, %98 : vector<8x128xf32>
    %cst_36 = arith.constant 0.000000e+00 : f32
    %100 = vector.broadcast %cst_36 : f32 to vector<8x128xf32>
    %101 = vector.extract_strided_slice %4 {offsets = [72, 0], sizes = [8, 8], strides = [1, 1]} : vector<96x8xf32> to vector<8x8xf32>
    %c-32_i32 = arith.constant -32 : i32
    %102 = vector.broadcast %c-32_i32 : i32 to vector<128x128xi32>
    %103 = arith.addi %12, %102 : vector<128x128xi32>
    %104 = arith.cmpi eq, %11, %103 : vector<128x128xi32>
    %105 = arith.extui %104 : vector<128x128xi1> to vector<128x128xi32>
    %106 = arith.sitofp %105 : vector<128x128xi32> to vector<128x128xf32>
    %cst_37 = arith.constant dense<0.000000e+00> : vector<8x128xf32>
    %107 = tpu.matmul %99, %106, %cst_37 {dimension_numbers = #tpu.dot_dimension_numbers<[1], [0], [0], [1], [0, 0, 1, 1], [], []>} : vector<8x128xf32>, vector<128x128xf32>, vector<8x128xf32> -> vector<8x128xf32>
    %cst_38 = arith.constant dense<0.000000e+00> : vector<8x128xf32>
    %108 = tpu.matmul %101, %107, %cst_38 {dimension_numbers = #tpu.dot_dimension_numbers<[1], [0], [0], [1], [0, 0, 1, 1], [], []>} : vector<8x8xf32>, vector<8x128xf32>, vector<8x128xf32> -> vector<8x128xf32>
    %109 = arith.addf %100, %108 : vector<8x128xf32>
    %110 = vector.extract_strided_slice %4 {offsets = [80, 0], sizes = [8, 8], strides = [1, 1]} : vector<96x8xf32> to vector<8x8xf32>
    %cst_39 = arith.constant dense<0.000000e+00> : vector<8x128xf32>
    %111 = tpu.matmul %110, %99, %cst_39 {dimension_numbers = #tpu.dot_dimension_numbers<[1], [0], [0], [1], [0, 0, 1, 1], [], []>} : vector<8x8xf32>, vector<8x128xf32>, vector<8x128xf32> -> vector<8x128xf32>
    %112 = arith.addf %109, %111 : vector<8x128xf32>
    %113 = vector.extract_strided_slice %4 {offsets = [88, 0], sizes = [8, 8], strides = [1, 1]} : vector<96x8xf32> to vector<8x8xf32>
    %c32_i32 = arith.constant 32 : i32
    %114 = vector.broadcast %c32_i32 : i32 to vector<128x128xi32>
    %115 = arith.addi %12, %114 : vector<128x128xi32>
    %116 = arith.cmpi eq, %11, %115 : vector<128x128xi32>
    %117 = arith.extui %116 : vector<128x128xi1> to vector<128x128xi32>
    %118 = arith.sitofp %117 : vector<128x128xi32> to vector<128x128xf32>
    %cst_40 = arith.constant dense<0.000000e+00> : vector<8x128xf32>
    %119 = tpu.matmul %99, %118, %cst_40 {dimension_numbers = #tpu.dot_dimension_numbers<[1], [0], [0], [1], [0, 0, 1, 1], [], []>} : vector<8x128xf32>, vector<128x128xf32>, vector<8x128xf32> -> vector<8x128xf32>
    %cst_41 = arith.constant dense<0.000000e+00> : vector<8x128xf32>
    %120 = tpu.matmul %113, %119, %cst_41 {dimension_numbers = #tpu.dot_dimension_numbers<[1], [0], [0], [1], [0, 0, 1, 1], [], []>} : vector<8x8xf32>, vector<8x128xf32>, vector<8x128xf32> -> vector<8x128xf32>
    %121 = arith.addf %112, %120 : vector<8x128xf32>
    %122 = vector.extract_strided_slice %5 {offsets = [24, 0], sizes = [8, 1], strides = [1, 1]} : vector<32x1xf32> to vector<8x1xf32>
    %123 = vector.broadcast %122 : vector<8x1xf32> to vector<8x128xf32>
    %124 = arith.addf %121, %123 : vector<8x128xf32>
    %125 = vector.extract_strided_slice %10 {offsets = [32, 0], sizes = [8, 128], strides = [1, 1]} : vector<96x128xf32> to vector<8x128xf32>
    %cst_42 = arith.constant 0.000000e+00 : f32
    %126 = vector.broadcast %cst_42 : f32 to vector<8x128xf32>
    %127 = arith.maximumf %125, %126 : vector<8x128xf32>
    %c-8_i32_43 = arith.constant -8 : i32
    %128 = vector.broadcast %c-8_i32_43 : i32 to vector<128x128xi32>
    %129 = arith.addi %12, %128 : vector<128x128xi32>
    %130 = arith.cmpi eq, %11, %129 : vector<128x128xi32>
    %131 = arith.extui %130 : vector<128x128xi1> to vector<128x128xi32>
    %132 = arith.sitofp %131 : vector<128x128xi32> to vector<128x128xf32>
    %cst_44 = arith.constant dense<0.000000e+00> : vector<8x128xf32>
    %133 = tpu.matmul %127, %132, %cst_44 {dimension_numbers = #tpu.dot_dimension_numbers<[1], [0], [0], [1], [0, 0, 1, 1], [], []>} : vector<8x128xf32>, vector<128x128xf32>, vector<8x128xf32> -> vector<8x128xf32>
    %134 = arith.maximumf %133, %127 : vector<8x128xf32>
    %c8_i32_45 = arith.constant 8 : i32
    %135 = vector.broadcast %c8_i32_45 : i32 to vector<128x128xi32>
    %136 = arith.addi %12, %135 : vector<128x128xi32>
    %137 = arith.cmpi eq, %11, %136 : vector<128x128xi32>
    %138 = arith.extui %137 : vector<128x128xi1> to vector<128x128xi32>
    %139 = arith.sitofp %138 : vector<128x128xi32> to vector<128x128xf32>
    %cst_46 = arith.constant dense<0.000000e+00> : vector<8x128xf32>
    %140 = tpu.matmul %127, %139, %cst_46 {dimension_numbers = #tpu.dot_dimension_numbers<[1], [0], [0], [1], [0, 0, 1, 1], [], []>} : vector<8x128xf32>, vector<128x128xf32>, vector<8x128xf32> -> vector<8x128xf32>
    %141 = arith.maximumf %134, %140 : vector<8x128xf32>
    %142 = vector.broadcast %6 : vector<8x1xf32> to vector<8x128xf32>
    %143 = arith.mulf %141, %142 : vector<8x128xf32>
    %144 = vector.broadcast %7 : vector<8x1xf32> to vector<8x128xf32>
    %145 = arith.addf %143, %144 : vector<8x128xf32>
    %146 = vector.extract_strided_slice %10 {offsets = [40, 0], sizes = [8, 128], strides = [1, 1]} : vector<96x128xf32> to vector<8x128xf32>
    %147 = tpu.concatenate %40, %68, %96, %124, %145, %146 in 0 : vector<8x128xf32>, vector<8x128xf32>, vector<8x128xf32>, vector<8x128xf32>, vector<8x128xf32>, vector<8x128xf32> -> vector<48x128xf32>
    %148 = vector.extract_strided_slice %10 {offsets = [48, 0], sizes = [48, 128], strides = [1, 1]} : vector<96x128xf32> to vector<48x128xf32>
    %149 = arith.addf %147, %148 : vector<48x128xf32>
    %cst_47 = arith.constant 0.000000e+00 : f32
    %150 = vector.broadcast %cst_47 : f32 to vector<48x128xf32>
    %151 = arith.maximumf %149, %150 : vector<48x128xf32>
    %c0_48 = arith.constant 0 : index
    %c0_49 = arith.constant 0 : index
    %c0_50 = arith.constant 0 : index
    %152 = vector.load %arg8[%c0_48, %c0_49, %c0_50] : memref<1x48x128xf32, #tpu.memory_space<vmem>>, vector<1x48x128xf32>
    %153 = vector.shape_cast %152 : vector<1x48x128xf32> to vector<48x128xf32>
    %154 = vector.shape_cast %151 : vector<48x128xf32> to vector<1x48x128xf32>
    tpu.vector_store %arg8[%c0_48, %c0_49, %c0_50], %154 {strides = array<i32>} : memref<1x48x128xf32, #tpu.memory_space<vmem>>, vector<1x48x128xf32>,
    return
  }
  func.func @transform_0(%arg0: i32) -> (i32, i32, i32) {
    %c0_i32 = arith.constant 0 : i32
    %c0_i32_0 = arith.constant 0 : i32
    %c0_i32_1 = arith.constant 0 : i32
    return %arg0, %c0_i32, %c0_i32_0 : i32, i32, i32
  }
  func.func @transform_1(%arg0: i32) -> (i32, i32) {
    %c0_i32 = arith.constant 0 : i32
    %c0_i32_0 = arith.constant 0 : i32
    %c0_i32_1 = arith.constant 0 : i32
    return %c0_i32, %c0_i32_0 : i32, i32
  }
  func.func @transform_2(%arg0: i32) -> (i32, i32) {
    %c0_i32 = arith.constant 0 : i32
    %c0_i32_0 = arith.constant 0 : i32
    %c0_i32_1 = arith.constant 0 : i32
    return %c0_i32, %c0_i32_0 : i32, i32
  }
  func.func @transform_3(%arg0: i32) -> (i32, i32) {
    %c0_i32 = arith.constant 0 : i32
    %c0_i32_0 = arith.constant 0 : i32
    %c0_i32_1 = arith.constant 0 : i32
    return %c0_i32, %c0_i32_0 : i32, i32
  }
  func.func @transform_4(%arg0: i32) -> (i32, i32) {
    %c0_i32 = arith.constant 0 : i32
    %c0_i32_0 = arith.constant 0 : i32
    %c0_i32_1 = arith.constant 0 : i32
    return %c0_i32, %c0_i32_0 : i32, i32
  }
  func.func @transform_5(%arg0: i32) -> (i32, i32) {
    %c0_i32 = arith.constant 0 : i32
    %c0_i32_0 = arith.constant 0 : i32
    %c0_i32_1 = arith.constant 0 : i32
    return %c0_i32, %c0_i32_0 : i32, i32
  }
  func.func @transform_6(%arg0: i32) -> (i32, i32) {
    %c0_i32 = arith.constant 0 : i32
    %c0_i32_0 = arith.constant 0 : i32
    %c0_i32_1 = arith.constant 0 : i32
    return %c0_i32, %c0_i32_0 : i32, i32
  }
  func.func @transform_7(%arg0: i32) -> (i32, i32, i32) {
    %c0_i32 = arith.constant 0 : i32
    %c0_i32_0 = arith.constant 0 : i32
    %c0_i32_1 = arith.constant 0 : i32
    return %arg0, %c0_i32, %c0_i32_0 : i32, i32, i32
  }
}

</mosaic_0001>

<llo_original>
// kernel: tpu_custom_call.1
$region0: #{tpu_custom_call.1}
  #allocation0 [shape = 'u32[]', space=smem, size = 0x4, offset = 0x4, fixed_abs, tag = 'smem constant byte address 0x4 - core index']
  #allocation1 [shape = 'u32[144,128]{1,0:T(1,128)}', space=vmem, size = 0x12000, scoped, tag = 'internal scratch']
  %s0 = inlined_call_operand.vmem [shape: f32[2,8,128], index: 0, kind: input, shape index: {}]
  %s1 = inlined_call_operand.vmem [shape: f32[96,8], index: 1, kind: input, shape index: {}]
  %s2 = inlined_call_operand.vmem [shape: f32[96,1], index: 2, kind: input, shape index: {}]
  %s3 = inlined_call_operand.vmem [shape: f32[96,8], index: 3, kind: input, shape index: {}]
  %s4 = inlined_call_operand.vmem [shape: f32[32,1], index: 4, kind: input, shape index: {}]
  %s5 = inlined_call_operand.vmem [shape: f32[8,1], index: 5, kind: input, shape index: {}]
  %s6 = inlined_call_operand.vmem [shape: f32[8,1], index: 6, kind: input, shape index: {}]
  %s7 = inlined_call_operand.hbm [shape: f32[2,48,128], index: 7, kind: output, shape index: {}]
  %s8 = sld [smem:[#allocation0]]
  $region61: #{tpu_custom_call.1} parent=0
    _
  %s10 = ssub.s32 1, %s8
  %s11 = scalar_select 0, %s10, %s8
  $region1: #{tpu_custom_call.1} parent=0
    #allocation2 [shape = 'u8[49152]{0}', space=vmem, size = 0xc000, scoped, tag = 'output window, operand 0']
    #allocation3 [shape = 's32[2]{0}', space=sflag, size = 0x8, scoped, tag = 'scoped memory for tpu_custom_call.1']
    %12 = vsyncpa [#allocation3], 0
    %s13 = scalar_lea.sflag [#allocation3], 1
    %14 = vsyncpa %s13, 0
    loop: start=0, step=1, limit=4
    $region2: #{tpu_custom_call.1} parent=1 // loop_pre_header
      _
    $region3: #{tpu_custom_call.1} parent=1 // loop_header
      %s16 = sphi 0, %s20
      %p17 = scmp.ge.s32.totalorder %s16, 4
      %s26 = sphi 0, %s28
      %s29 = sphi 0, %s26
      %s30 = sphi 0, %s29
      %s46 = sphi 0, %s30
      %s50 = sphi 0, %s50
      %s52 = sphi 0, %s50
      %s53 = sphi 0, %s52
      %s67 = sphi 0, %s53
      %s71 = sphi 0, %s71
      %s73 = sphi 0, %s71
      %s74 = sphi 0, %s73
      %s88 = sphi 0, %s74
      %s92 = sphi 0, %s92
      %s94 = sphi 0, %s92
      %s95 = sphi 0, %s94
      %s109 = sphi 0, %s95
      %s113 = sphi 0, %s113
      %s115 = sphi 0, %s113
      %s116 = sphi 0, %s115
      %s130 = sphi 0, %s116
      %s134 = sphi 0, %s134
      %s136 = sphi 0, %s134
      %s137 = sphi 0, %s136
      %s151 = sphi 0, %s137
      %s155 = sphi 0, %s155
      %s157 = sphi 0, %s155
      %s158 = sphi 0, %s157
      %s172 = sphi 0, %s158
      %s178 = sphi 0, %s180
      %s181 = sphi 0, %s178
      %s182 = sphi 0, %s181
      %s198 = sphi 0, %s182
    $region4: #{tpu_custom_call.1} parent=1 // loop_header_branch
      %19 = sbr.rel (%p17) target = $region8
    $region5: #{tpu_custom_call.1} parent=1 // loop_body
      %s21 = ssub.s32 %s16, 1
      %s22 = ssub.s32 %s16, 2
      %s23 = sadd.s32 %s16, 1
      %s24 = ssub.s32 %s16, %s23
      %p25 = scmp.eq.s32.totalorder %s24, 0
      %s27 = sadd.s32 %s26, 1
      %s28 = scalar_select %p25, %s26, %s27
      %p31 = pneg %p25
      %p32 = scmp.eq.s32.totalorder %s16, 1
      %p33 = por %p31, %p32
      %p34 = scmp.ne.s32.totalorder %s26, %s29
      %p35 = scmp.eq.s32.totalorder %s16, 0
      %p36 = por %p34, %p35
      %p37 = scmp.ne.s32.totalorder %s26, %s29
      %p38 = scmp.eq.s32.totalorder %s21, 1
      %p39 = por %p37, %p38
      %p40 = scmp.ne.s32.totalorder %s29, %s30
      %p41 = scmp.eq.s32.totalorder %s21, 0
      %p42 = por %p40, %p41
      %p43 = scmp.ne.s32.totalorder %s29, %s30
      %p44 = scmp.eq.s32.totalorder %s22, 1
      %p45 = por %p43, %p44
      %p47 = scmp.ne.s32.totalorder %s30, %s46
      %p48 = scmp.eq.s32.totalorder %s22, 0
      %p49 = por %p47, %p48
      %s51 = sadd.s32 %s50, 1
      %p54 = scmp.eq.s32.totalorder %s16, 1
      %p55 = scmp.ne.s32.totalorder %s50, %s52
      %p56 = scmp.eq.s32.totalorder %s16, 0
      %p57 = por %p55, %p56
      %p58 = scmp.ne.s32.totalorder %s50, %s52
      %p59 = scmp.eq.s32.totalorder %s21, 1
      %p60 = por %p58, %p59
      %p61 = scmp.ne.s32.totalorder %s52, %s53
      %p62 = scmp.eq.s32.totalorder %s21, 0
      %p63 = por %p61, %p62
      %p64 = scmp.ne.s32.totalorder %s52, %s53
      %p65 = scmp.eq.s32.totalorder %s22, 1
      %p66 = por %p64, %p65
      %p68 = scmp.ne.s32.totalorder %s53, %s67
      %p69 = scmp.eq.s32.totalorder %s22, 0
      %p70 = por %p68, %p69
      %s72 = sadd.s32 %s71, 1
      %p75 = scmp.eq.s32.totalorder %s16, 1
      %p76 = scmp.ne.s32.totalorder %s71, %s73
      %p77 = scmp.eq.s32.totalorder %s16, 0
      %p78 = por %p76, %p77
      %p79 = scmp.ne.s32.totalorder %s71, %s73
      %p80 = scmp.eq.s32.totalorder %s21, 1
      %p81 = por %p79, %p80
      %p82 = scmp.ne.s32.totalorder %s73, %s74
      %p83 = scmp.eq.s32.totalorder %s21, 0
      %p84 = por %p82, %p83
      %p85 = scmp.ne.s32.totalorder %s73, %s74
      %p86 = scmp.eq.s32.totalorder %s22, 1
      %p87 = por %p85, %p86
      %p89 = scmp.ne.s32.totalorder %s74, %s88
      %p90 = scmp.eq.s32.totalorder %s22, 0
      %p91 = por %p89, %p90
      %s93 = sadd.s32 %s92, 1
      %p96 = scmp.eq.s32.totalorder %s16, 1
      %p97 = scmp.ne.s32.totalorder %s92, %s94
      %p98 = scmp.eq.s32.totalorder %s16, 0
      %p99 = por %p97, %p98
      %p100 = scmp.ne.s32.totalorder %s92, %s94
      %p101 = scmp.eq.s32.totalorder %s21, 1
      %p102 = por %p100, %p101
      %p103 = scmp.ne.s32.totalorder %s94, %s95
      %p104 = scmp.eq.s32.totalorder %s21, 0
      %p105 = por %p103, %p104
      %p106 = scmp.ne.s32.totalorder %s94, %s95
      %p107 = scmp.eq.s32.totalorder %s22, 1
      %p108 = por %p106, %p107
      %p110 = scmp.ne.s32.totalorder %s95, %s109
      %p111 = scmp.eq.s32.totalorder %s22, 0
      %p112 = por %p110, %p111
      %s114 = sadd.s32 %s113, 1
      %p117 = scmp.eq.s32.totalorder %s16, 1
      %p118 = scmp.ne.s32.totalorder %s113, %s115
      %p119 = scmp.eq.s32.totalorder %s16, 0
      %p120 = por %p118, %p119
      %p121 = scmp.ne.s32.totalorder %s113, %s115
      %p122 = scmp.eq.s32.totalorder %s21, 1
      %p123 = por %p121, %p122
      %p124 = scmp.ne.s32.totalorder %s115, %s116
      %p125 = scmp.eq.s32.totalorder %s21, 0
      %p126 = por %p124, %p125
      %p127 = scmp.ne.s32.totalorder %s115, %s116
      %p128 = scmp.eq.s32.totalorder %s22, 1
      %p129 = por %p127, %p128
      %p131 = scmp.ne.s32.totalorder %s116, %s130
      %p132 = scmp.eq.s32.totalorder %s22, 0
      %p133 = por %p131, %p132
      %s135 = sadd.s32 %s134, 1
      %p138 = scmp.eq.s32.totalorder %s16, 1
      %p139 = scmp.ne.s32.totalorder %s134, %s136
      %p140 = scmp.eq.s32.totalorder %s16, 0
      %p141 = por %p139, %p140
      %p142 = scmp.ne.s32.totalorder %s134, %s136
      %p143 = scmp.eq.s32.totalorder %s21, 1
      %p144 = por %p142, %p143
      %p145 = scmp.ne.s32.totalorder %s136, %s137
      %p146 = scmp.eq.s32.totalorder %s21, 0
      %p147 = por %p145, %p146
      %p148 = scmp.ne.s32.totalorder %s136, %s137
      %p149 = scmp.eq.s32.totalorder %s22, 1
      %p150 = por %p148, %p149
      %p152 = scmp.ne.s32.totalorder %s137, %s151
      %p153 = scmp.eq.s32.totalorder %s22, 0
      %p154 = por %p152, %p153
      %s156 = sadd.s32 %s155, 1
      %p159 = scmp.eq.s32.totalorder %s16, 1
      %p160 = scmp.ne.s32.totalorder %s155, %s157
      %p161 = scmp.eq.s32.totalorder %s16, 0
      %p162 = por %p160, %p161
      %p163 = scmp.ne.s32.totalorder %s155, %s157
      %p164 = scmp.eq.s32.totalorder %s21, 1
      %p165 = por %p163, %p164
      %p166 = scmp.ne.s32.totalorder %s157, %s158
      %p167 = scmp.eq.s32.totalorder %s21, 0
      %p168 = por %p166, %p167
      %p169 = scmp.ne.s32.totalorder %s157, %s158
      %p170 = scmp.eq.s32.totalorder %s22, 1
      %p171 = por %p169, %p170
      %p173 = scmp.ne.s32.totalorder %s158, %s172
      %p174 = scmp.eq.s32.totalorder %s22, 0
      %p175 = por %p173, %p174
      %s176 = ssub.s32 %s16, %s23
      %p177 = scmp.eq.s32.totalorder %s176, 0
      %s179 = sadd.s32 %s178, 1
      %s180 = scalar_select %p177, %s178, %s179
      %p183 = pneg %p177
      %p184 = scmp.eq.s32.totalorder %s16, 1
      %p185 = por %p183, %p184
      %p186 = scmp.ne.s32.totalorder %s178, %s181
      %p187 = scmp.eq.s32.totalorder %s16, 0
      %p188 = por %p186, %p187
      %p189 = scmp.ne.s32.totalorder %s178, %s181
      %p190 = scmp.eq.s32.totalorder %s21, 1
      %p191 = por %p189, %p190
      %p192 = scmp.ne.s32.totalorder %s181, %s182
      %p193 = scmp.eq.s32.totalorder %s21, 0
      %p194 = por %p192, %p193
      %p195 = scmp.ne.s32.totalorder %s181, %s182
      %p196 = scmp.eq.s32.totalorder %s22, 1
      %p197 = por %p195, %p196
      %p199 = scmp.ne.s32.totalorder %s182, %s198
      %p200 = scmp.eq.s32.totalorder %s22, 0
      %p201 = por %p199, %p200
      %p202 = scmp.le.s32.totalorder 1, %s16
      %p203 = scmp.lt.s32.totalorder %s16, 3
      %p204 = pnand %p202, %p203
      %p205 = pneg %p204
      // Predicated region
      $region9: #{tpu_custom_call.1} parent=5 // pred_check
        _
      $region10: #{tpu_custom_call.1} parent=5 // pred_check_branch
        %207 = sbr.rel (%p204) target = $region12
      $region11: #{tpu_custom_call.1} parent=5 // pred_region
        %s208 = ssub.s32 %s16, 1
        // Predicated region
        $region13: #{tpu_custom_call.1} parent=11 // pred_check
          %p209 = pneg %p63
        $region14: #{tpu_custom_call.1} parent=11 // pred_check_branch
          %211 = sbr.rel (%p209) target = $region16
        $region15: #{tpu_custom_call.1} parent=11 // pred_region
          _
        $region16: #{tpu_custom_call.1} parent=11 // pred_fallthru
          _
        // Predicated region
        $region17: #{tpu_custom_call.1} parent=11 // pred_check
          %p212 = pneg %p84
        $region18: #{tpu_custom_call.1} parent=11 // pred_check_branch
          %214 = sbr.rel (%p212) target = $region20
        $region19: #{tpu_custom_call.1} parent=11 // pred_region
          _
        $region20: #{tpu_custom_call.1} parent=11 // pred_fallthru
          _
        // Predicated region
        $region21: #{tpu_custom_call.1} parent=11 // pred_check
          %p215 = pneg %p105
        $region22: #{tpu_custom_call.1} parent=11 // pred_check_branch
          %217 = sbr.rel (%p215) target = $region24
        $region23: #{tpu_custom_call.1} parent=11 // pred_region
          _
        $region24: #{tpu_custom_call.1} parent=11 // pred_fallthru
          _
        // Predicated region
        $region25: #{tpu_custom_call.1} parent=11 // pred_check
          %p218 = pneg %p126
        $region26: #{tpu_custom_call.1} parent=11 // pred_check_branch
          %220 = sbr.rel (%p218) target = $region28
        $region27: #{tpu_custom_call.1} parent=11 // pred_region
          _
        $region28: #{tpu_custom_call.1} parent=11 // pred_fallthru
          _
        // Predicated region
        $region29: #{tpu_custom_call.1} parent=11 // pred_check
          %p221 = pneg %p147
        $region30: #{tpu_custom_call.1} parent=11 // pred_check_branch
          %223 = sbr.rel (%p221) target = $region32
        $region31: #{tpu_custom_call.1} parent=11 // pred_region
          _
        $region32: #{tpu_custom_call.1} parent=11 // pred_fallthru
          _
        // Predicated region
        $region33: #{tpu_custom_call.1} parent=11 // pred_check
          %p224 = pneg %p168
        $region34: #{tpu_custom_call.1} parent=11 // pred_check_branch
          %226 = sbr.rel (%p224) target = $region36
        $region35: #{tpu_custom_call.1} parent=11 // pred_region
          _
        $region36: #{tpu_custom_call.1} parent=11 // pred_fallthru
          _
      $region12: #{tpu_custom_call.1} parent=5 // pred_fallthru
        _
      %p227 = scmp.lt.s32.totalorder %s16, 2
      // Predicated region
      $region37: #{tpu_custom_call.1} parent=5 // pred_check
        %p228 = pneg %p227
      $region38: #{tpu_custom_call.1} parent=5 // pred_check_branch
        %230 = sbr.rel (%p228) target = $region40
      $region39: #{tpu_custom_call.1} parent=5 // pred_region
        // Predicated region
        $region41: #{tpu_custom_call.1} parent=39 // pred_check
          %p231 = pneg %p36
        $region42: #{tpu_custom_call.1} parent=39 // pred_check_branch
          %233 = sbr.rel (%p231) target = $region44
        $region43: #{tpu_custom_call.1} parent=39 // pred_region
          %p234 = scmp.lt.s32.totalorder %s16, 1
          %s235 = scalar_select %p234, %s16, 1
          %s236 = smul.addr %s235, 8
          %s237 = scalar_lea.vmem %s0, %s236
        $region44: #{tpu_custom_call.1} parent=39 // pred_fallthru
          _
      $region40: #{tpu_custom_call.1} parent=5 // pred_fallthru
        _
      %p238 = scmp.le.s32.totalorder 1, %s16
      %p239 = scmp.lt.s32.totalorder %s16, 3
      %p240 = pnand %p238, %p239
      %p241 = pneg %p240
      // Predicated region
      $region45: #{tpu_custom_call.1} parent=5 // pred_check
        _
      $region46: #{tpu_custom_call.1} parent=5 // pred_check_branch
        %243 = sbr.rel (%p240) target = $region48
      $region47: #{tpu_custom_call.1} parent=5 // pred_region
        %s244 = ssub.s32 %s16, 1
        %p245 = scmp.lt.s32.totalorder %s21, 1
        %s246 = scalar_select %p245, %s21, 1
        %s247 = smul.addr %s246, 8
        %s248 = scalar_lea.vmem %s0, %s247
        %p249 = pneg %p42
        %p250 = pneg %p39
        %p251 = pneg %p63
        %p252 = pneg %p60
        %p253 = pneg %p84
        %p254 = pneg %p81
        %p255 = pneg %p105
        %p256 = pneg %p102
        %p257 = pneg %p126
        %p258 = pneg %p123
        %p259 = pneg %p147
        %p260 = pneg %p144
        %p261 = pneg %p168
        %p262 = pneg %p165
        %p263 = pneg %p194
        %p264 = pneg %p191
        %s265 = sand.u32 %s181, 1
        %s266 = scalar_lea.sflag [#allocation3], %s265
        %s267 = sand.u32 %s181, 1
        %s268 = smul.addr %s267, 48
        %s269 = scalar_lea.vmem [#allocation2], %s268
        %p270 = scmp.lt.s32.totalorder %s21, 1
        %s271 = scalar_select %p270, %s21, 1
        %s272 = smul.addr %s271, 8
        %s273 = scalar_lea.vmem %s0, %s272
        %v274 = vld [vmem:[%s273] sm:$0xff]
        %v275 = vld [vmem:[%s1] sm:$0xff]
        %v276 = vld [vmem:[%s1 + $0x8] sm:$0xff]
        %v277 = vld [vmem:[%s1 + $0x10] sm:$0xff]
        %v278 = vld [vmem:[%s1 + $0x18] sm:$0xff]
        %v279 = vld [vmem:[%s1 + $0x20] sm:$0xff]
        %v280 = vld [vmem:[%s1 + $0x28] sm:$0xff]
        %v281 = vld [vmem:[%s1 + $0x30] sm:$0xff]
        %v282 = vld [vmem:[%s1 + $0x38] sm:$0xff]
        %v283 = vld [vmem:[%s1 + $0x40] sm:$0xff]
        %v284 = vld [vmem:[%s1 + $0x48] sm:$0xff]
        %v285 = vld [vmem:[%s1 + $0x50] sm:$0xff]
        %v286 = vld [vmem:[%s1 + $0x58] sm:$0xff]
        %v287 = vld [vmem:[%s2] sm:$0xff]
        %v288 = vld [vmem:[%s2 + $0x8] sm:$0xff]
        %v289 = vld [vmem:[%s2 + $0x10] sm:$0xff]
        %v290 = vld [vmem:[%s2 + $0x18] sm:$0xff]
        %v291 = vld [vmem:[%s2 + $0x20] sm:$0xff]
        %v292 = vld [vmem:[%s2 + $0x28] sm:$0xff]
        %v293 = vld [vmem:[%s2 + $0x30] sm:$0xff]
        %v294 = vld [vmem:[%s2 + $0x38] sm:$0xff]
        %v295 = vld [vmem:[%s2 + $0x40] sm:$0xff]
        %v296 = vld [vmem:[%s2 + $0x48] sm:$0xff]
        %v297 = vld [vmem:[%s2 + $0x50] sm:$0xff]
        %v298 = vld [vmem:[%s2 + $0x58] sm:$0xff]
        %v299 = vld [vmem:[%s3] sm:$0xff]
        %v300 = vld [vmem:[%s3 + $0x8] sm:$0xff]
        %v301 = vld [vmem:[%s3 + $0x10] sm:$0xff]
        %v302 = vld [vmem:[%s3 + $0x18] sm:$0xff]
        %v303 = vld [vmem:[%s3 + $0x20] sm:$0xff]
        %v304 = vld [vmem:[%s3 + $0x28] sm:$0xff]
        %v305 = vld [vmem:[%s3 + $0x30] sm:$0xff]
        %v306 = vld [vmem:[%s3 + $0x38] sm:$0xff]
        %v307 = vld [vmem:[%s3 + $0x40] sm:$0xff]
        %v308 = vld [vmem:[%s3 + $0x48] sm:$0xff]
        %v309 = vld [vmem:[%s3 + $0x50] sm:$0xff]
        %v310 = vld [vmem:[%s3 + $0x58] sm:$0xff]
        %v311 = vld [vmem:[%s4] sm:$0xff]
        %v312 = vld [vmem:[%s4 + $0x8] sm:$0xff]
        %v313 = vld [vmem:[%s4 + $0x10] sm:$0xff]
        %v314 = vld [vmem:[%s4 + $0x18] sm:$0xff]
        %v315 = vld [vmem:[%s5] sm:$0xff]
        %v316 = vld [vmem:[%s6] sm:$0xff]
        %318 = vset.pattern.permute.xlu0 0
        %319 = vperm.xlu0 %318, %v287
        %v320 = vpop.permute.xlu0 %319
        %323 = vset.pattern.permute.xlu0 0
        %324 = vperm.xlu0 %323, %v288
        %v325 = vpop.permute.xlu0 %324
        %328 = vset.pattern.permute.xlu0 0
        %329 = vperm.xlu0 %328, %v289
        %v330 = vpop.permute.xlu0 %329
        %333 = vset.pattern.permute.xlu0 0
        %334 = vperm.xlu0 %333, %v290
        %v335 = vpop.permute.xlu0 %334
        %338 = vset.pattern.permute.xlu0 0
        %339 = vperm.xlu0 %338, %v291
        %v340 = vpop.permute.xlu0 %339
        %343 = vset.pattern.permute.xlu0 0
        %344 = vperm.xlu0 %343, %v292
        %v345 = vpop.permute.xlu0 %344
        %348 = vset.pattern.permute.xlu0 0
        %349 = vperm.xlu0 %348, %v293
        %v350 = vpop.permute.xlu0 %349
        %353 = vset.pattern.permute.xlu0 0
        %354 = vperm.xlu0 %353, %v294
        %v355 = vpop.permute.xlu0 %354
        %358 = vset.pattern.permute.xlu0 0
        %359 = vperm.xlu0 %358, %v295
        %v360 = vpop.permute.xlu0 %359
        %363 = vset.pattern.permute.xlu0 0
        %364 = vperm.xlu0 %363, %v296
        %v365 = vpop.permute.xlu0 %364
        %368 = vset.pattern.permute.xlu0 0
        %369 = vperm.xlu0 %368, %v297
        %v370 = vpop.permute.xlu0 %369
        %373 = vset.pattern.permute.xlu0 0
        %374 = vperm.xlu0 %373, %v298
        %v375 = vpop.permute.xlu0 %374
        %vm377 = vcmask 64512
        %v379 = vsel %vm377, %v275, 0
        %v382 = vsel %vm377, %v276, 0
        %v385 = vsel %vm377, %v277, 0
        %v388 = vsel %vm377, %v278, 0
        %v391 = vsel %vm377, %v279, 0
        %v394 = vsel %vm377, %v280, 0
        %v397 = vsel %vm377, %v281, 0
        %v400 = vsel %vm377, %v282, 0
        %v403 = vsel %vm377, %v283, 0
        %v406 = vsel %vm377, %v284, 0
        %v409 = vsel %vm377, %v285, 0
        %v412 = vsel %vm377, %v286, 0
        %414 = vmatprep.subr.mxu0 0.0
        %415 = vmatpush1.msra.mxu0 %v274
        %416 = vmatprep.subr.mxu0 0.0
        %417 = vmatpush1.msra.mxu0 0.0
        %418 = vmatprep.subr.mxu0 0.0
        %419 = vmatpush1.msra.mxu0 0.0
        %420 = vmatprep.subr.mxu0 0.0
        %421 = vmatpush1.msra.mxu0 0.0
        %422 = vmatprep.subr.mxu0 0.0
        %423 = vmatpush1.msra.mxu0 0.0
        %424 = vmatprep.subr.mxu0 0.0
        %425 = vmatpush1.msra.mxu0 0.0
        %426 = vmatprep.subr.mxu0 0.0
        %427 = vmatpush1.msra.mxu0 0.0
        %428 = vmatprep.subr.mxu0 0.0
        %429 = vmatpush1.msra.mxu0 0.0
        %430 = vmatprep.subr.mxu0 0.0
        %431 = vmatpush1.msra.mxu0 0.0
        %432 = vmatprep.subr.mxu0 0.0
        %433 = vmatpush1.msra.mxu0 0.0
        %434 = vmatprep.subr.mxu0 0.0
        %435 = vmatpush1.msra.mxu0 0.0
        %436 = vmatprep.subr.mxu0 0.0
        %437 = vmatpush1.msra.mxu0 0.0
        %438 = vmatprep.subr.mxu0 0.0
        %439 = vmatpush1.msra.mxu0 0.0
        %440 = vmatprep.subr.mxu0 0.0
        %441 = vmatpush1.msra.mxu0 0.0
        %442 = vmatprep.subr.mxu0 0.0
        %443 = vmatpush1.msra.mxu0 0.0
        %444 = vmatprep.subr.mxu0 0.0
        %445 = vmatpush1.msra.mxu0 0.0
        %446 = vmatprep.subr.mxu0 0.0
        %447 = vmatpush1.msra.mxu0 0.0
        %448 = vmatprep.subr.mxu0 0.0
        %449 = vmatpush1.msra.mxu0 0.0
        %450 = vmatprep.subr.mxu0 0.0
        %451 = vmatpush1.msra.mxu0 0.0
        %452 = vmatprep.subr.mxu0 0.0
        %453 = vmatpush1.msra.mxu0 0.0
        %454 = vmatprep.subr.mxu0 0.0
        %455 = vmatpush1.msra.mxu0 0.0
        %456 = vmatprep.subr.mxu0 0.0
        %457 = vmatpush1.msra.mxu0 0.0
        %458 = vmatprep.subr.mxu0 0.0
        %459 = vmatpush1.msra.mxu0 0.0
        %460 = vmatprep.subr.mxu0 0.0
        %461 = vmatpush1.msra.mxu0 0.0
        %462 = vmatprep.subr.mxu0 0.0
        %463 = vmatpush1.msra.mxu0 0.0
        %464 = vmatprep.subr.mxu0 0.0
        %465 = vmatpush1.msra.mxu0 0.0
        %466 = vmatprep.subr.mxu0 0.0
        %467 = vmatpush1.msra.mxu0 0.0
        %468 = vmatprep.subr.mxu0 0.0
        %469 = vmatpush1.msra.mxu0 0.0
        %470 = vmatprep.subr.mxu0 0.0
        %471 = vmatpush1.msra.mxu0 0.0
        %472 = vmatprep.subr.mxu0 0.0
        %473 = vmatpush1.msra.mxu0 0.0
        %474 = vmatprep.subr.mxu0 0.0
        %475 = vmatpush1.msra.mxu0 0.0
        %476 = vmatprep.subr.mxu0 0.0
        %477 = vmatpush1.msra.mxu0 0.0
        %478 = vmatprep.mubr.f32.mxu0 0.0
        %479 = vmatmul.mubr.f32.gmra.mrb[0].mxu0 %v379
        %v480 = vpop.f32.mrb[0].mxu0
        %v481 = vadd.f32 %v320, %v480
        %v482 = vpop.f32.mrb[0].mxu0
        %483 = vmatprep.mubr.f32.mxu0 0.0
        %484 = vmatmul.mubr.f32.gmra.mrb[0].mxu0 %v382
        %v485 = vpop.f32.mrb[0].mxu0
        %v486 = vadd.f32 %v325, %v485
        %v487 = vpop.f32.mrb[0].mxu0
        %488 = vmatprep.mubr.f32.mxu0 0.0
        %489 = vmatmul.mubr.f32.gmra.mrb[0].mxu0 %v385
        %v490 = vpop.f32.mrb[0].mxu0
        %v491 = vadd.f32 %v330, %v490
        %v492 = vpop.f32.mrb[0].mxu0
        %493 = vmatprep.mubr.f32.mxu0 0.0
        %494 = vmatmul.mubr.f32.gmra.mrb[0].mxu0 %v388
        %v495 = vpop.f32.mrb[0].mxu0
        %v496 = vadd.f32 %v335, %v495
        %v497 = vpop.f32.mrb[0].mxu0
        %498 = vmatprep.mubr.f32.mxu0 0.0
        %499 = vmatmul.mubr.f32.gmra.mrb[0].mxu0 %v391
        %v500 = vpop.f32.mrb[0].mxu0
        %v501 = vadd.f32 %v340, %v500
        %v502 = vpop.f32.mrb[0].mxu0
        %503 = vmatprep.mubr.f32.mxu0 0.0
        %504 = vmatmul.mubr.f32.gmra.mrb[0].mxu0 %v394
        %v505 = vpop.f32.mrb[0].mxu0
        %v506 = vadd.f32 %v345, %v505
        %v507 = vpop.f32.mrb[0].mxu0
        %508 = vmatprep.mubr.f32.mxu0 0.0
        %509 = vmatmul.mubr.f32.gmra.mrb[0].mxu0 %v397
        %v510 = vpop.f32.mrb[0].mxu0
        %v511 = vadd.f32 %v350, %v510
        %v512 = vpop.f32.mrb[0].mxu0
        %513 = vmatprep.mubr.f32.mxu0 0.0
        %514 = vmatmul.mubr.f32.gmra.mrb[0].mxu0 %v400
        %v515 = vpop.f32.mrb[0].mxu0
        %v516 = vadd.f32 %v355, %v515
        %v517 = vpop.f32.mrb[0].mxu0
        %518 = vmatprep.mubr.f32.mxu0 0.0
        %519 = vmatmul.mubr.f32.gmra.mrb[0].mxu0 %v403
        %v520 = vpop.f32.mrb[0].mxu0
        %v521 = vadd.f32 %v360, %v520
        %v522 = vpop.f32.mrb[0].mxu0
        %523 = vmatprep.mubr.f32.mxu0 0.0
        %524 = vmatmul.mubr.f32.gmra.mrb[0].mxu0 %v406
        %v525 = vpop.f32.mrb[0].mxu0
        %v526 = vadd.f32 %v365, %v525
        %v527 = vpop.f32.mrb[0].mxu0
        %528 = vmatprep.mubr.f32.mxu0 0.0
        %529 = vmatmul.mubr.f32.gmra.mrb[0].mxu0 %v409
        %v530 = vpop.f32.mrb[0].mxu0
        %v531 = vadd.f32 %v370, %v530
        %v532 = vpop.f32.mrb[0].mxu0
        %533 = vmatprep.mubr.f32.mxu0 0.0
        %534 = vmatmul.mubr.f32.gmra.mrb[0].mxu0 %v412
        %v535 = vpop.f32.mrb[0].mxu0
        %v536 = vadd.f32 %v375, %v535
        %v537 = vpop.f32.mrb[0].mxu0
        %538 = vdwg.mxu0
        %v539 = vlaneseq
        %v540 = vshrl.u32 %v539, 7
        %v541 = vadd.s32 %v540, 8
        %v542 = vadd.s32 %v540, 16
        %v543 = vadd.s32 %v540, 24
        %v544 = vadd.s32 %v540, 32
        %v545 = vadd.s32 %v540, 40
        %v546 = vadd.s32 %v540, 48
        %v547 = vadd.s32 %v540, 56
        %v548 = vadd.s32 %v540, 64
        %v549 = vadd.s32 %v540, 72
        %v550 = vadd.s32 %v540, 80
        %v551 = vadd.s32 %v540, 88
        %v552 = vadd.s32 %v540, 96
        %v553 = vadd.s32 %v540, 104
        %v554 = vadd.s32 %v540, 112
        %v555 = vadd.s32 %v540, 120
        %v556 = vlaneseq
        %v557 = vand.u32 %v556, 127
        %v558 = vmax.f32 %v481, 0.0
        %v559 = vadd.s32 %v557, 4294967288
        %vm560 = vcmp.eq.s32.totalorder %v540, %v559
        %vm561 = vcmp.eq.s32.totalorder %v541, %v559
        %vm562 = vcmp.eq.s32.totalorder %v542, %v559
        %vm563 = vcmp.eq.s32.totalorder %v543, %v559
        %vm564 = vcmp.eq.s32.totalorder %v544, %v559
        %vm565 = vcmp.eq.s32.totalorder %v545, %v559
        %vm566 = vcmp.eq.s32.totalorder %v546, %v559
        %vm567 = vcmp.eq.s32.totalorder %v547, %v559
        %vm568 = vcmp.eq.s32.totalorder %v548, %v559
        %vm569 = vcmp.eq.s32.totalorder %v549, %v559
        %vm570 = vcmp.eq.s32.totalorder %v550, %v559
        %vm571 = vcmp.eq.s32.totalorder %v551, %v559
        %vm572 = vcmp.eq.s32.totalorder %v552, %v559
        %vm573 = vcmp.eq.s32.totalorder %v553, %v559
        %vm574 = vcmp.eq.s32.totalorder %v554, %v559
        %vm575 = vcmp.eq.s32.totalorder %v555, %v559
        %v576 = vsel %vm560, 1, 0
        %v577 = vsel %vm561, 1, 0
        %v578 = vsel %vm562, 1, 0
        %v579 = vsel %vm563, 1, 0
        %v580 = vsel %vm564, 1, 0
        %v581 = vsel %vm565, 1, 0
        %v582 = vsel %vm566, 1, 0
        %v583 = vsel %vm567, 1, 0
        %v584 = vsel %vm568, 1, 0
        %v585 = vsel %vm569, 1, 0
        %v586 = vsel %vm570, 1, 0
        %v587 = vsel %vm571, 1, 0
        %v588 = vsel %vm572, 1, 0
        %v589 = vsel %vm573, 1, 0
        %v590 = vsel %vm574, 1, 0
        %v591 = vsel %vm575, 1, 0
        %v592 = vcvt.s32.f32 %v576
        %v593 = vcvt.s32.f32 %v577
        %v594 = vcvt.s32.f32 %v578
        %v595 = vcvt.s32.f32 %v579
        %v596 = vcvt.s32.f32 %v580
        %v597 = vcvt.s32.f32 %v581
        %v598 = vcvt.s32.f32 %v582
        %v599 = vcvt.s32.f32 %v583
        %v600 = vcvt.s32.f32 %v584
        %v601 = vcvt.s32.f32 %v585
        %v602 = vcvt.s32.f32 %v586
        %v603 = vcvt.s32.f32 %v587
        %v604 = vcvt.s32.f32 %v588
        %v605 = vcvt.s32.f32 %v589
        %v606 = vcvt.s32.f32 %v590
        %v607 = vcvt.s32.f32 %v591
        %608 = vmatprep.subr.mxu0 0.0
        %609 = vmatpush1.msra.mxu0 %v592
        %610 = vmatprep.subr.mxu0 0.0
        %611 = vmatpush1.msra.mxu0 %v593
        %612 = vmatprep.subr.mxu0 0.0
        %613 = vmatpush1.msra.mxu0 %v594
        %614 = vmatprep.subr.mxu0 0.0
        %615 = vmatpush1.msra.mxu0 %v595
        %616 = vmatprep.subr.mxu0 0.0
        %617 = vmatpush1.msra.mxu0 %v596
        %618 = vmatprep.subr.mxu0 0.0
        %619 = vmatpush1.msra.mxu0 %v597
        %620 = vmatprep.subr.mxu0 0.0
        %621 = vmatpush1.msra.mxu0 %v598
        %622 = vmatprep.subr.mxu0 0.0
        %623 = vmatpush1.msra.mxu0 %v599
        %624 = vmatprep.subr.mxu0 0.0
        %625 = vmatpush1.msra.mxu0 %v600
        %626 = vmatprep.subr.mxu0 0.0
        %627 = vmatpush1.msra.mxu0 %v601
        %628 = vmatprep.subr.mxu0 0.0
        %629 = vmatpush1.msra.mxu0 %v602
        %630 = vmatprep.subr.mxu0 0.0
        %631 = vmatpush1.msra.mxu0 %v603
        %632 = vmatprep.subr.mxu0 0.0
        %633 = vmatpush1.msra.mxu0 %v604
        %634 = vmatprep.subr.mxu0 0.0
        %635 = vmatpush1.msra.mxu0 %v605
        %636 = vmatprep.subr.mxu0 0.0
        %637 = vmatpush1.msra.mxu0 %v606
        %638 = vmatprep.subr.mxu0 0.0
        %639 = vmatpush1.msra.mxu0 %v607
        %640 = vmatprep.subr.mxu0 0.0
        %641 = vmatpush1.msra.mxu0 0.0
        %642 = vmatprep.subr.mxu0 0.0
        %643 = vmatpush1.msra.mxu0 0.0
        %644 = vmatprep.subr.mxu0 0.0
        %645 = vmatpush1.msra.mxu0 0.0
        %646 = vmatprep.subr.mxu0 0.0
        %647 = vmatpush1.msra.mxu0 0.0
        %648 = vmatprep.subr.mxu0 0.0
        %649 = vmatpush1.msra.mxu0 0.0
        %650 = vmatprep.subr.mxu0 0.0
        %651 = vmatpush1.msra.mxu0 0.0
        %652 = vmatprep.subr.mxu0 0.0
        %653 = vmatpush1.msra.mxu0 0.0
        %654 = vmatprep.subr.mxu0 0.0
        %655 = vmatpush1.msra.mxu0 0.0
        %656 = vmatprep.subr.mxu0 0.0
        %657 = vmatpush1.msra.mxu0 0.0
        %658 = vmatprep.subr.mxu0 0.0
        %659 = vmatpush1.msra.mxu0 0.0
        %660 = vmatprep.subr.mxu0 0.0
        %661 = vmatpush1.msra.mxu0 0.0
        %662 = vmatprep.subr.mxu0 0.0
        %663 = vmatpush1.msra.mxu0 0.0
        %664 = vmatprep.subr.mxu0 0.0
        %665 = vmatpush1.msra.mxu0 0.0
        %666 = vmatprep.subr.mxu0 0.0
        %667 = vmatpush1.msra.mxu0 0.0
        %668 = vmatprep.subr.mxu0 0.0
        %669 = vmatpush1.msra.mxu0 0.0
        %670 = vmatprep.subr.mxu0 0.0
        %671 = vmatpush1.msra.mxu0 0.0
        %672 = vmatprep.mubr.f32.mxu0 0.0
        %673 = vmatmul.mubr.f32.gmra.mrb[0].mxu0 %v558
        %v674 = vpop.f32.mrb[0].mxu0
        %v675 = vadd.f32 0.0, %v674
        %v676 = vpop.f32.mrb[0].mxu0
        %677 = vdwg.mxu0
        %v679 = vsel %vm377, %v300, 0
        %681 = vmatprep.subr.mxu0 0.0
        %682 = vmatpush1.msra.mxu0 %v558
        %683 = vmatprep.subr.mxu0 0.0
        %684 = vmatpush1.msra.mxu0 0.0
        %685 = vmatprep.subr.mxu0 0.0
        %686 = vmatpush1.msra.mxu0 0.0
        %687 = vmatprep.subr.mxu0 0.0
        %688 = vmatpush1.msra.mxu0 0.0
        %689 = vmatprep.subr.mxu0 0.0
        %690 = vmatpush1.msra.mxu0 0.0
        %691 = vmatprep.subr.mxu0 0.0
        %692 = vmatpush1.msra.mxu0 0.0
        %693 = vmatprep.subr.mxu0 0.0
        %694 = vmatpush1.msra.mxu0 0.0
        %695 = vmatprep.subr.mxu0 0.0
        %696 = vmatpush1.msra.mxu0 0.0
        %697 = vmatprep.subr.mxu0 0.0
        %698 = vmatpush1.msra.mxu0 0.0
        %699 = vmatprep.subr.mxu0 0.0
        %700 = vmatpush1.msra.mxu0 0.0
        %701 = vmatprep.subr.mxu0 0.0
        %702 = vmatpush1.msra.mxu0 0.0
        %703 = vmatprep.subr.mxu0 0.0
        %704 = vmatpush1.msra.mxu0 0.0
        %705 = vmatprep.subr.mxu0 0.0
        %706 = vmatpush1.msra.mxu0 0.0
        %707 = vmatprep.subr.mxu0 0.0
        %708 = vmatpush1.msra.mxu0 0.0
        %709 = vmatprep.subr.mxu0 0.0
        %710 = vmatpush1.msra.mxu0 0.0
        %711 = vmatprep.subr.mxu0 0.0
        %712 = vmatpush1.msra.mxu0 0.0
        %713 = vmatprep.subr.mxu0 0.0
        %714 = vmatpush1.msra.mxu0 0.0
        %715 = vmatprep.subr.mxu0 0.0
        %716 = vmatpush1.msra.mxu0 0.0
        %717 = vmatprep.subr.mxu0 0.0
        %718 = vmatpush1.msra.mxu0 0.0
        %719 = vmatprep.subr.mxu0 0.0
        %720 = vmatpush1.msra.mxu0 0.0
        %721 = vmatprep.subr.mxu0 0.0
        %722 = vmatpush1.msra.mxu0 0.0
        %723 = vmatprep.subr.mxu0 0.0
        %724 = vmatpush1.msra.mxu0 0.0
        %725 = vmatprep.subr.mxu0 0.0
        %726 = vmatpush1.msra.mxu0 0.0
        %727 = vmatprep.subr.mxu0 0.0
        %728 = vmatpush1.msra.mxu0 0.0
        %729 = vmatprep.subr.mxu0 0.0
        %730 = vmatpush1.msra.mxu0 0.0
        %731 = vmatprep.subr.mxu0 0.0
        %732 = vmatpush1.msra.mxu0 0.0
        %733 = vmatprep.subr.mxu0 0.0
        %734 = vmatpush1.msra.mxu0 0.0
        %735 = vmatprep.subr.mxu0 0.0
        %736 = vmatpush1.msra.mxu0 0.0
        %737 = vmatprep.subr.mxu0 0.0
        %738 = vmatpush1.msra.mxu0 0.0
        %739 = vmatprep.subr.mxu0 0.0
        %740 = vmatpush1.msra.mxu0 0.0
        %741 = vmatprep.subr.mxu0 0.0
        %742 = vmatpush1.msra.mxu0 0.0
        %743 = vmatprep.subr.mxu0 0.0
        %744 = vmatpush1.msra.mxu0 0.0
        %745 = vmatprep.mubr.f32.mxu0 0.0
        %746 = vmatmul.mubr.f32.gmra.mrb[0].mxu0 %v679
        %v747 = vpop.f32.mrb[0].mxu0
        %v748 = vadd.f32 0.0, %v747
        %v749 = vpop.f32.mrb[0].mxu0
        %750 = vdwg.mxu0
        %v752 = vsel %vm377, %v299, 0
        %754 = vmatprep.subr.mxu0 0.0
        %755 = vmatpush1.msra.mxu0 %v675
        %756 = vmatprep.subr.mxu0 0.0
        %757 = vmatpush1.msra.mxu0 0.0
        %758 = vmatprep.subr.mxu0 0.0
        %759 = vmatpush1.msra.mxu0 0.0
        %760 = vmatprep.subr.mxu0 0.0
        %761 = vmatpush1.msra.mxu0 0.0
        %762 = vmatprep.subr.mxu0 0.0
        %763 = vmatpush1.msra.mxu0 0.0
        %764 = vmatprep.subr.mxu0 0.0
        %765 = vmatpush1.msra.mxu0 0.0
        %766 = vmatprep.subr.mxu0 0.0
        %767 = vmatpush1.msra.mxu0 0.0
        %768 = vmatprep.subr.mxu0 0.0
        %769 = vmatpush1.msra.mxu0 0.0
        %770 = vmatprep.subr.mxu0 0.0
        %771 = vmatpush1.msra.mxu0 0.0
        %772 = vmatprep.subr.mxu0 0.0
        %773 = vmatpush1.msra.mxu0 0.0
        %774 = vmatprep.subr.mxu0 0.0
        %775 = vmatpush1.msra.mxu0 0.0
        %776 = vmatprep.subr.mxu0 0.0
        %777 = vmatpush1.msra.mxu0 0.0
        %778 = vmatprep.subr.mxu0 0.0
        %779 = vmatpush1.msra.mxu0 0.0
        %780 = vmatprep.subr.mxu0 0.0
        %781 = vmatpush1.msra.mxu0 0.0
        %782 = vmatprep.subr.mxu0 0.0
        %783 = vmatpush1.msra.mxu0 0.0
        %784 = vmatprep.subr.mxu0 0.0
        %785 = vmatpush1.msra.mxu0 0.0
        %786 = vmatprep.subr.mxu0 0.0
        %787 = vmatpush1.msra.mxu0 0.0
        %788 = vmatprep.subr.mxu0 0.0
        %789 = vmatpush1.msra.mxu0 0.0
        %790 = vmatprep.subr.mxu0 0.0
        %791 = vmatpush1.msra.mxu0 0.0
        %792 = vmatprep.subr.mxu0 0.0
        %793 = vmatpush1.msra.mxu0 0.0
        %794 = vmatprep.subr.mxu0 0.0
        %795 = vmatpush1.msra.mxu0 0.0
        %796 = vmatprep.subr.mxu0 0.0
        %797 = vmatpush1.msra.mxu0 0.0
        %798 = vmatprep.subr.mxu0 0.0
        %799 = vmatpush1.msra.mxu0 0.0
        %800 = vmatprep.subr.mxu0 0.0
        %801 = vmatpush1.msra.mxu0 0.0
        %802 = vmatprep.subr.mxu0 0.0
        %803 = vmatpush1.msra.mxu0 0.0
        %804 = vmatprep.subr.mxu0 0.0
        %805 = vmatpush1.msra.mxu0 0.0
        %806 = vmatprep.subr.mxu0 0.0
        %807 = vmatpush1.msra.mxu0 0.0
        %808 = vmatprep.subr.mxu0 0.0
        %809 = vmatpush1.msra.mxu0 0.0
        %810 = vmatprep.subr.mxu0 0.0
        %811 = vmatpush1.msra.mxu0 0.0
        %812 = vmatprep.subr.mxu0 0.0
        %813 = vmatpush1.msra.mxu0 0.0
        %814 = vmatprep.subr.mxu0 0.0
        %815 = vmatpush1.msra.mxu0 0.0
        %816 = vmatprep.subr.mxu0 0.0
        %817 = vmatpush1.msra.mxu0 0.0
        %818 = vmatprep.mubr.f32.mxu0 0.0
        %819 = vmatmul.mubr.f32.gmra.mrb[0].mxu0 %v752
        %v820 = vpop.f32.mrb[0].mxu0
        %v821 = vadd.f32 %v748, %v820
        %v822 = vpop.f32.mrb[0].mxu0
        %823 = vdwg.mxu0
        %v824 = vadd.s32 %v557, 8
        %vm825 = vcmp.eq.s32.totalorder %v540, %v824
        %vm826 = vcmp.eq.s32.totalorder %v541, %v824
        %vm827 = vcmp.eq.s32.totalorder %v542, %v824
        %vm828 = vcmp.eq.s32.totalorder %v543, %v824
        %vm829 = vcmp.eq.s32.totalorder %v544, %v824
        %vm830 = vcmp.eq.s32.totalorder %v545, %v824
        %vm831 = vcmp.eq.s32.totalorder %v546, %v824
        %vm832 = vcmp.eq.s32.totalorder %v547, %v824
        %vm833 = vcmp.eq.s32.totalorder %v548, %v824
        %vm834 = vcmp.eq.s32.totalorder %v549, %v824
        %vm835 = vcmp.eq.s32.totalorder %v550, %v824
        %vm836 = vcmp.eq.s32.totalorder %v551, %v824
        %vm837 = vcmp.eq.s32.totalorder %v552, %v824
        %vm838 = vcmp.eq.s32.totalorder %v553, %v824
        %vm839 = vcmp.eq.s32.totalorder %v554, %v824
        %vm840 = vcmp.eq.s32.totalorder %v555, %v824
        %v841 = vsel %vm825, 1, 0
        %v842 = vsel %vm826, 1, 0
        %v843 = vsel %vm827, 1, 0
        %v844 = vsel %vm828, 1, 0
        %v845 = vsel %vm829, 1, 0
        %v846 = vsel %vm830, 1, 0
        %v847 = vsel %vm831, 1, 0
        %v848 = vsel %vm832, 1, 0
        %v849 = vsel %vm833, 1, 0
        %v850 = vsel %vm834, 1, 0
        %v851 = vsel %vm835, 1, 0
        %v852 = vsel %vm836, 1, 0
        %v853 = vsel %vm837, 1, 0
        %v854 = vsel %vm838, 1, 0
        %v855 = vsel %vm839, 1, 0
        %v856 = vsel %vm840, 1, 0
        %v857 = vcvt.s32.f32 %v841
        %v858 = vcvt.s32.f32 %v842
        %v859 = vcvt.s32.f32 %v843
        %v860 = vcvt.s32.f32 %v844
        %v861 = vcvt.s32.f32 %v845
        %v862 = vcvt.s32.f32 %v846
        %v863 = vcvt.s32.f32 %v847
        %v864 = vcvt.s32.f32 %v848
        %v865 = vcvt.s32.f32 %v849
        %v866 = vcvt.s32.f32 %v850
        %v867 = vcvt.s32.f32 %v851
        %v868 = vcvt.s32.f32 %v852
        %v869 = vcvt.s32.f32 %v853
        %v870 = vcvt.s32.f32 %v854
        %v871 = vcvt.s32.f32 %v855
        %v872 = vcvt.s32.f32 %v856
        %873 = vmatprep.subr.mxu0 0.0
        %874 = vmatpush1.msra.mxu0 %v857
        %875 = vmatprep.subr.mxu0 0.0
        %876 = vmatpush1.msra.mxu0 %v858
        %877 = vmatprep.subr.mxu0 0.0
        %878 = vmatpush1.msra.mxu0 %v859
        %879 = vmatprep.subr.mxu0 0.0
        %880 = vmatpush1.msra.mxu0 %v860
        %881 = vmatprep.subr.mxu0 0.0
        %882 = vmatpush1.msra.mxu0 %v861
        %883 = vmatprep.subr.mxu0 0.0
        %884 = vmatpush1.msra.mxu0 %v862
        %885 = vmatprep.subr.mxu0 0.0
        %886 = vmatpush1.msra.mxu0 %v863
        %887 = vmatprep.subr.mxu0 0.0
        %888 = vmatpush1.msra.mxu0 %v864
        %889 = vmatprep.subr.mxu0 0.0
        %890 = vmatpush1.msra.mxu0 %v865
        %891 = vmatprep.subr.mxu0 0.0
        %892 = vmatpush1.msra.mxu0 %v866
        %893 = vmatprep.subr.mxu0 0.0
        %894 = vmatpush1.msra.mxu0 %v867
        %895 = vmatprep.subr.mxu0 0.0
        %896 = vmatpush1.msra.mxu0 %v868
        %897 = vmatprep.subr.mxu0 0.0
        %898 = vmatpush1.msra.mxu0 %v869
        %899 = vmatprep.subr.mxu0 0.0
        %900 = vmatpush1.msra.mxu0 %v870
        %901 = vmatprep.subr.mxu0 0.0
        %902 = vmatpush1.msra.mxu0 %v871
        %903 = vmatprep.subr.mxu0 0.0
        %904 = vmatpush1.msra.mxu0 %v872
        %905 = vmatprep.subr.mxu0 0.0
        %906 = vmatpush1.msra.mxu0 0.0
        %907 = vmatprep.subr.mxu0 0.0
        %908 = vmatpush1.msra.mxu0 0.0
        %909 = vmatprep.subr.mxu0 0.0
        %910 = vmatpush1.msra.mxu0 0.0
        %911 = vmatprep.subr.mxu0 0.0
        %912 = vmatpush1.msra.mxu0 0.0
        %913 = vmatprep.subr.mxu0 0.0
        %914 = vmatpush1.msra.mxu0 0.0
        %915 = vmatprep.subr.mxu0 0.0
        %916 = vmatpush1.msra.mxu0 0.0
        %917 = vmatprep.subr.mxu0 0.0
        %918 = vmatpush1.msra.mxu0 0.0
        %919 = vmatprep.subr.mxu0 0.0
        %920 = vmatpush1.msra.mxu0 0.0
        %921 = vmatprep.subr.mxu0 0.0
        %922 = vmatpush1.msra.mxu0 0.0
        %923 = vmatprep.subr.mxu0 0.0
        %924 = vmatpush1.msra.mxu0 0.0
        %925 = vmatprep.subr.mxu0 0.0
        %926 = vmatpush1.msra.mxu0 0.0
        %927 = vmatprep.subr.mxu0 0.0
        %928 = vmatpush1.msra.mxu0 0.0
        %929 = vmatprep.subr.mxu0 0.0
        %930 = vmatpush1.msra.mxu0 0.0
        %931 = vmatprep.subr.mxu0 0.0
        %932 = vmatpush1.msra.mxu0 0.0
        %933 = vmatprep.subr.mxu0 0.0
        %934 = vmatpush1.msra.mxu0 0.0
        %935 = vmatprep.subr.mxu0 0.0
        %936 = vmatpush1.msra.mxu0 0.0
        %937 = vmatprep.mubr.f32.mxu0 0.0
        %938 = vmatmul.mubr.f32.gmra.mrb[0].mxu0 %v558
        %v939 = vpop.f32.mrb[0].mxu0
        %v940 = vadd.f32 0.0, %v939
        %v941 = vpop.f32.mrb[0].mxu0
        %942 = vdwg.mxu0
        %v944 = vsel %vm377, %v301, 0
        %946 = vmatprep.subr.mxu0 0.0
        %947 = vmatpush1.msra.mxu0 %v940
        %948 = vmatprep.subr.mxu0 0.0
        %949 = vmatpush1.msra.mxu0 0.0
        %950 = vmatprep.subr.mxu0 0.0
        %951 = vmatpush1.msra.mxu0 0.0
        %952 = vmatprep.subr.mxu0 0.0
        %953 = vmatpush1.msra.mxu0 0.0
        %954 = vmatprep.subr.mxu0 0.0
        %955 = vmatpush1.msra.mxu0 0.0
        %956 = vmatprep.subr.mxu0 0.0
        %957 = vmatpush1.msra.mxu0 0.0
        %958 = vmatprep.subr.mxu0 0.0
        %959 = vmatpush1.msra.mxu0 0.0
        %960 = vmatprep.subr.mxu0 0.0
        %961 = vmatpush1.msra.mxu0 0.0
        %962 = vmatprep.subr.mxu0 0.0
        %963 = vmatpush1.msra.mxu0 0.0
        %964 = vmatprep.subr.mxu0 0.0
        %965 = vmatpush1.msra.mxu0 0.0
        %966 = vmatprep.subr.mxu0 0.0
        %967 = vmatpush1.msra.mxu0 0.0
        %968 = vmatprep.subr.mxu0 0.0
        %969 = vmatpush1.msra.mxu0 0.0
        %970 = vmatprep.subr.mxu0 0.0
        %971 = vmatpush1.msra.mxu0 0.0
        %972 = vmatprep.subr.mxu0 0.0
        %973 = vmatpush1.msra.mxu0 0.0
        %974 = vmatprep.subr.mxu0 0.0
        %975 = vmatpush1.msra.mxu0 0.0
        %976 = vmatprep.subr.mxu0 0.0
        %977 = vmatpush1.msra.mxu0 0.0
        %978 = vmatprep.subr.mxu0 0.0
        %979 = vmatpush1.msra.mxu0 0.0
        %980 = vmatprep.subr.mxu0 0.0
        %981 = vmatpush1.msra.mxu0 0.0
        %982 = vmatprep.subr.mxu0 0.0
        %983 = vmatpush1.msra.mxu0 0.0
        %984 = vmatprep.subr.mxu0 0.0
        %985 = vmatpush1.msra.mxu0 0.0
        %986 = vmatprep.subr.mxu0 0.0
        %987 = vmatpush1.msra.mxu0 0.0
        %988 = vmatprep.subr.mxu0 0.0
        %989 = vmatpush1.msra.mxu0 0.0
        %990 = vmatprep.subr.mxu0 0.0
        %991 = vmatpush1.msra.mxu0 0.0
        %992 = vmatprep.subr.mxu0 0.0
        %993 = vmatpush1.msra.mxu0 0.0
        %994 = vmatprep.subr.mxu0 0.0
        %995 = vmatpush1.msra.mxu0 0.0
        %996 = vmatprep.subr.mxu0 0.0
        %997 = vmatpush1.msra.mxu0 0.0
        %998 = vmatprep.subr.mxu0 0.0
        %999 = vmatpush1.msra.mxu0 0.0
        %1000 = vmatprep.subr.mxu0 0.0
        %1001 = vmatpush1.msra.mxu0 0.0
        %1002 = vmatprep.subr.mxu0 0.0
        %1003 = vmatpush1.msra.mxu0 0.0
        %1004 = vmatprep.subr.mxu0 0.0
        %1005 = vmatpush1.msra.mxu0 0.0
        %1006 = vmatprep.subr.mxu0 0.0
        %1007 = vmatpush1.msra.mxu0 0.0
        %1008 = vmatprep.subr.mxu0 0.0
        %1009 = vmatpush1.msra.mxu0 0.0
        %1010 = vmatprep.mubr.f32.mxu0 0.0
        %1011 = vmatmul.mubr.f32.gmra.mrb[0].mxu0 %v944
        %v1012 = vpop.f32.mrb[0].mxu0
        %v1013 = vadd.f32 0.0, %v1012
        %v1014 = vpop.f32.mrb[0].mxu0
        %1015 = vdwg.mxu0
        %v1016 = vadd.f32 %v821, %v1013
        %1018 = vset.pattern.permute.xlu0 0
        %1019 = vperm.xlu0 %1018, %v311
        %v1020 = vpop.permute.xlu0 %1019
        %v1022 = vadd.f32 %v1016, %v1020
        %v1023 = vmax.f32 %v486, 0.0
        %v1024 = vadd.s32 %v557, 4294967280
        %vm1025 = vcmp.eq.s32.totalorder %v540, %v1024
        %vm1026 = vcmp.eq.s32.totalorder %v541, %v1024
        %vm1027 = vcmp.eq.s32.totalorder %v542, %v1024
        %vm1028 = vcmp.eq.s32.totalorder %v543, %v1024
        %vm1029 = vcmp.eq.s32.totalorder %v544, %v1024
        %vm1030 = vcmp.eq.s32.totalorder %v545, %v1024
        %vm1031 = vcmp.eq.s32.totalorder %v546, %v1024
        %vm1032 = vcmp.eq.s32.totalorder %v547, %v1024
        %vm1033 = vcmp.eq.s32.totalorder %v548, %v1024
        %vm1034 = vcmp.eq.s32.totalorder %v549, %v1024
        %vm1035 = vcmp.eq.s32.totalorder %v550, %v1024
        %vm1036 = vcmp.eq.s32.totalorder %v551, %v1024
        %vm1037 = vcmp.eq.s32.totalorder %v552, %v1024
        %vm1038 = vcmp.eq.s32.totalorder %v553, %v1024
        %vm1039 = vcmp.eq.s32.totalorder %v554, %v1024
        %vm1040 = vcmp.eq.s32.totalorder %v555, %v1024
        %v1041 = vsel %vm1025, 1, 0
        %v1042 = vsel %vm1026, 1, 0
        %v1043 = vsel %vm1027, 1, 0
        %v1044 = vsel %vm1028, 1, 0
        %v1045 = vsel %vm1029, 1, 0
        %v1046 = vsel %vm1030, 1, 0
        %v1047 = vsel %vm1031, 1, 0
        %v1048 = vsel %vm1032, 1, 0
        %v1049 = vsel %vm1033, 1, 0
        %v1050 = vsel %vm1034, 1, 0
        %v1051 = vsel %vm1035, 1, 0
        %v1052 = vsel %vm1036, 1, 0
        %v1053 = vsel %vm1037, 1, 0
        %v1054 = vsel %vm1038, 1, 0
        %v1055 = vsel %vm1039, 1, 0
        %v1056 = vsel %vm1040, 1, 0
        %v1057 = vcvt.s32.f32 %v1041
        %v1058 = vcvt.s32.f32 %v1042
        %v1059 = vcvt.s32.f32 %v1043
        %v1060 = vcvt.s32.f32 %v1044
        %v1061 = vcvt.s32.f32 %v1045
        %v1062 = vcvt.s32.f32 %v1046
        %v1063 = vcvt.s32.f32 %v1047
        %v1064 = vcvt.s32.f32 %v1048
        %v1065 = vcvt.s32.f32 %v1049
        %v1066 = vcvt.s32.f32 %v1050
        %v1067 = vcvt.s32.f32 %v1051
        %v1068 = vcvt.s32.f32 %v1052
        %v1069 = vcvt.s32.f32 %v1053
        %v1070 = vcvt.s32.f32 %v1054
        %v1071 = vcvt.s32.f32 %v1055
        %v1072 = vcvt.s32.f32 %v1056
        %1073 = vmatprep.subr.mxu0 0.0
        %1074 = vmatpush1.msra.mxu0 %v1057
        %1075 = vmatprep.subr.mxu0 0.0
        %1076 = vmatpush1.msra.mxu0 %v1058
        %1077 = vmatprep.subr.mxu0 0.0
        %1078 = vmatpush1.msra.mxu0 %v1059
        %1079 = vmatprep.subr.mxu0 0.0
        %1080 = vmatpush1.msra.mxu0 %v1060
        %1081 = vmatprep.subr.mxu0 0.0
        %1082 = vmatpush1.msra.mxu0 %v1061
        %1083 = vmatprep.subr.mxu0 0.0
        %1084 = vmatpush1.msra.mxu0 %v1062
        %1085 = vmatprep.subr.mxu0 0.0
        %1086 = vmatpush1.msra.mxu0 %v1063
        %1087 = vmatprep.subr.mxu0 0.0
        %1088 = vmatpush1.msra.mxu0 %v1064
        %1089 = vmatprep.subr.mxu0 0.0
        %1090 = vmatpush1.msra.mxu0 %v1065
        %1091 = vmatprep.subr.mxu0 0.0
        %1092 = vmatpush1.msra.mxu0 %v1066
        %1093 = vmatprep.subr.mxu0 0.0
        %1094 = vmatpush1.msra.mxu0 %v1067
        %1095 = vmatprep.subr.mxu0 0.0
        %1096 = vmatpush1.msra.mxu0 %v1068
        %1097 = vmatprep.subr.mxu0 0.0
        %1098 = vmatpush1.msra.mxu0 %v1069
        %1099 = vmatprep.subr.mxu0 0.0
        %1100 = vmatpush1.msra.mxu0 %v1070
        %1101 = vmatprep.subr.mxu0 0.0
        %1102 = vmatpush1.msra.mxu0 %v1071
        %1103 = vmatprep.subr.mxu0 0.0
        %1104 = vmatpush1.msra.mxu0 %v1072
        %1105 = vmatprep.subr.mxu0 0.0
        %1106 = vmatpush1.msra.mxu0 0.0
        %1107 = vmatprep.subr.mxu0 0.0
        %1108 = vmatpush1.msra.mxu0 0.0
        %1109 = vmatprep.subr.mxu0 0.0
        %1110 = vmatpush1.msra.mxu0 0.0
        %1111 = vmatprep.subr.mxu0 0.0
        %1112 = vmatpush1.msra.mxu0 0.0
        %1113 = vmatprep.subr.mxu0 0.0
        %1114 = vmatpush1.msra.mxu0 0.0
        %1115 = vmatprep.subr.mxu0 0.0
        %1116 = vmatpush1.msra.mxu0 0.0
        %1117 = vmatprep.subr.mxu0 0.0
        %1118 = vmatpush1.msra.mxu0 0.0
        %1119 = vmatprep.subr.mxu0 0.0
        %1120 = vmatpush1.msra.mxu0 0.0
        %1121 = vmatprep.subr.mxu0 0.0
        %1122 = vmatpush1.msra.mxu0 0.0
        %1123 = vmatprep.subr.mxu0 0.0
        %1124 = vmatpush1.msra.mxu0 0.0
        %1125 = vmatprep.subr.mxu0 0.0
        %1126 = vmatpush1.msra.mxu0 0.0
        %1127 = vmatprep.subr.mxu0 0.0
        %1128 = vmatpush1.msra.mxu0 0.0
        %1129 = vmatprep.subr.mxu0 0.0
        %1130 = vmatpush1.msra.mxu0 0.0
        %1131 = vmatprep.subr.mxu0 0.0
        %1132 = vmatpush1.msra.mxu0 0.0
        %1133 = vmatprep.subr.mxu0 0.0
        %1134 = vmatpush1.msra.mxu0 0.0
        %1135 = vmatprep.subr.mxu0 0.0
        %1136 = vmatpush1.msra.mxu0 0.0
        %1137 = vmatprep.mubr.f32.mxu0 0.0
        %1138 = vmatmul.mubr.f32.gmra.mrb[0].mxu0 %v1023
        %v1139 = vpop.f32.mrb[0].mxu0
        %v1140 = vadd.f32 0.0, %v1139
        %v1141 = vpop.f32.mrb[0].mxu0
        %1142 = vdwg.mxu0
        %v1144 = vsel %vm377, %v303, 0
        %1146 = vmatprep.subr.mxu0 0.0
        %1147 = vmatpush1.msra.mxu0 %v1023
        %1148 = vmatprep.subr.mxu0 0.0
        %1149 = vmatpush1.msra.mxu0 0.0
        %1150 = vmatprep.subr.mxu0 0.0
        %1151 = vmatpush1.msra.mxu0 0.0
        %1152 = vmatprep.subr.mxu0 0.0
        %1153 = vmatpush1.msra.mxu0 0.0
        %1154 = vmatprep.subr.mxu0 0.0
        %1155 = vmatpush1.msra.mxu0 0.0
        %1156 = vmatprep.subr.mxu0 0.0
        %1157 = vmatpush1.msra.mxu0 0.0
        %1158 = vmatprep.subr.mxu0 0.0
        %1159 = vmatpush1.msra.mxu0 0.0
        %1160 = vmatprep.subr.mxu0 0.0
        %1161 = vmatpush1.msra.mxu0 0.0
        %1162 = vmatprep.subr.mxu0 0.0
        %1163 = vmatpush1.msra.mxu0 0.0
        %1164 = vmatprep.subr.mxu0 0.0
        %1165 = vmatpush1.msra.mxu0 0.0
        %1166 = vmatprep.subr.mxu0 0.0
        %1167 = vmatpush1.msra.mxu0 0.0
        %1168 = vmatprep.subr.mxu0 0.0
        %1169 = vmatpush1.msra.mxu0 0.0
        %1170 = vmatprep.subr.mxu0 0.0
        %1171 = vmatpush1.msra.mxu0 0.0
        %1172 = vmatprep.subr.mxu0 0.0
        %1173 = vmatpush1.msra.mxu0 0.0
        %1174 = vmatprep.subr.mxu0 0.0
        %1175 = vmatpush1.msra.mxu0 0.0
        %1176 = vmatprep.subr.mxu0 0.0
        %1177 = vmatpush1.msra.mxu0 0.0
        %1178 = vmatprep.subr.mxu0 0.0
        %1179 = vmatpush1.msra.mxu0 0.0
        %1180 = vmatprep.subr.mxu0 0.0
        %1181 = vmatpush1.msra.mxu0 0.0
        %1182 = vmatprep.subr.mxu0 0.0
        %1183 = vmatpush1.msra.mxu0 0.0
        %1184 = vmatprep.subr.mxu0 0.0
        %1185 = vmatpush1.msra.mxu0 0.0
        %1186 = vmatprep.subr.mxu0 0.0
        %1187 = vmatpush1.msra.mxu0 0.0
        %1188 = vmatprep.subr.mxu0 0.0
        %1189 = vmatpush1.msra.mxu0 0.0
        %1190 = vmatprep.subr.mxu0 0.0
        %1191 = vmatpush1.msra.mxu0 0.0
        %1192 = vmatprep.subr.mxu0 0.0
        %1193 = vmatpush1.msra.mxu0 0.0
        %1194 = vmatprep.subr.mxu0 0.0
        %1195 = vmatpush1.msra.mxu0 0.0
        %1196 = vmatprep.subr.mxu0 0.0
        %1197 = vmatpush1.msra.mxu0 0.0
        %1198 = vmatprep.subr.mxu0 0.0
        %1199 = vmatpush1.msra.mxu0 0.0
        %1200 = vmatprep.subr.mxu0 0.0
        %1201 = vmatpush1.msra.mxu0 0.0
        %1202 = vmatprep.subr.mxu0 0.0
        %1203 = vmatpush1.msra.mxu0 0.0
        %1204 = vmatprep.subr.mxu0 0.0
        %1205 = vmatpush1.msra.mxu0 0.0
        %1206 = vmatprep.subr.mxu0 0.0
        %1207 = vmatpush1.msra.mxu0 0.0
        %1208 = vmatprep.subr.mxu0 0.0
        %1209 = vmatpush1.msra.mxu0 0.0
        %1210 = vmatprep.mubr.f32.mxu0 0.0
        %1211 = vmatmul.mubr.f32.gmra.mrb[0].mxu0 %v1144
        %v1212 = vpop.f32.mrb[0].mxu0
        %v1213 = vadd.f32 0.0, %v1212
        %v1214 = vpop.f32.mrb[0].mxu0
        %1215 = vdwg.mxu0
        %v1217 = vsel %vm377, %v302, 0
        %1219 = vmatprep.subr.mxu0 0.0
        %1220 = vmatpush1.msra.mxu0 %v1140
        %1221 = vmatprep.subr.mxu0 0.0
        %1222 = vmatpush1.msra.mxu0 0.0
        %1223 = vmatprep.subr.mxu0 0.0
        %1224 = vmatpush1.msra.mxu0 0.0
        %1225 = vmatprep.subr.mxu0 0.0
        %1226 = vmatpush1.msra.mxu0 0.0
        %1227 = vmatprep.subr.mxu0 0.0
        %1228 = vmatpush1.msra.mxu0 0.0
        %1229 = vmatprep.subr.mxu0 0.0
        %1230 = vmatpush1.msra.mxu0 0.0
        %1231 = vmatprep.subr.mxu0 0.0
        %1232 = vmatpush1.msra.mxu0 0.0
        %1233 = vmatprep.subr.mxu0 0.0
        %1234 = vmatpush1.msra.mxu0 0.0
        %1235 = vmatprep.subr.mxu0 0.0
        %1236 = vmatpush1.msra.mxu0 0.0
        %1237 = vmatprep.subr.mxu0 0.0
        %1238 = vmatpush1.msra.mxu0 0.0
        %1239 = vmatprep.subr.mxu0 0.0
        %1240 = vmatpush1.msra.mxu0 0.0
        %1241 = vmatprep.subr.mxu0 0.0
        %1242 = vmatpush1.msra.mxu0 0.0
        %1243 = vmatprep.subr.mxu0 0.0
        %1244 = vmatpush1.msra.mxu0 0.0
        %1245 = vmatprep.subr.mxu0 0.0
        %1246 = vmatpush1.msra.mxu0 0.0
        %1247 = vmatprep.subr.mxu0 0.0
        %1248 = vmatpush1.msra.mxu0 0.0
        %1249 = vmatprep.subr.mxu0 0.0
        %1250 = vmatpush1.msra.mxu0 0.0
        %1251 = vmatprep.subr.mxu0 0.0
        %1252 = vmatpush1.msra.mxu0 0.0
        %1253 = vmatprep.subr.mxu0 0.0
        %1254 = vmatpush1.msra.mxu0 0.0
        %1255 = vmatprep.subr.mxu0 0.0
        %1256 = vmatpush1.msra.mxu0 0.0
        %1257 = vmatprep.subr.mxu0 0.0
        %1258 = vmatpush1.msra.mxu0 0.0
        %1259 = vmatprep.subr.mxu0 0.0
        %1260 = vmatpush1.msra.mxu0 0.0
        %1261 = vmatprep.subr.mxu0 0.0
        %1262 = vmatpush1.msra.mxu0 0.0
        %1263 = vmatprep.subr.mxu0 0.0
        %1264 = vmatpush1.msra.mxu0 0.0
        %1265 = vmatprep.subr.mxu0 0.0
        %1266 = vmatpush1.msra.mxu0 0.0
        %1267 = vmatprep.subr.mxu0 0.0
        %1268 = vmatpush1.msra.mxu0 0.0
        %1269 = vmatprep.subr.mxu0 0.0
        %1270 = vmatpush1.msra.mxu0 0.0
        %1271 = vmatprep.subr.mxu0 0.0
        %1272 = vmatpush1.msra.mxu0 0.0
        %1273 = vmatprep.subr.mxu0 0.0
        %1274 = vmatpush1.msra.mxu0 0.0
        %1275 = vmatprep.subr.mxu0 0.0
        %1276 = vmatpush1.msra.mxu0 0.0
        %1277 = vmatprep.subr.mxu0 0.0
        %1278 = vmatpush1.msra.mxu0 0.0
        %1279 = vmatprep.subr.mxu0 0.0
        %1280 = vmatpush1.msra.mxu0 0.0
        %1281 = vmatprep.subr.mxu0 0.0
        %1282 = vmatpush1.msra.mxu0 0.0
        %1283 = vmatprep.mubr.f32.mxu0 0.0
        %1284 = vmatmul.mubr.f32.gmra.mrb[0].mxu0 %v1217
        %v1285 = vpop.f32.mrb[0].mxu0
        %v1286 = vadd.f32 %v1213, %v1285
        %v1287 = vpop.f32.mrb[0].mxu0
        %1288 = vdwg.mxu0
        %v1289 = vadd.s32 %v557, 16
        %vm1290 = vcmp.eq.s32.totalorder %v540, %v1289
        %vm1291 = vcmp.eq.s32.totalorder %v541, %v1289
        %vm1292 = vcmp.eq.s32.totalorder %v542, %v1289
        %vm1293 = vcmp.eq.s32.totalorder %v543, %v1289
        %vm1294 = vcmp.eq.s32.totalorder %v544, %v1289
        %vm1295 = vcmp.eq.s32.totalorder %v545, %v1289
        %vm1296 = vcmp.eq.s32.totalorder %v546, %v1289
        %vm1297 = vcmp.eq.s32.totalorder %v547, %v1289
        %vm1298 = vcmp.eq.s32.totalorder %v548, %v1289
        %vm1299 = vcmp.eq.s32.totalorder %v549, %v1289
        %vm1300 = vcmp.eq.s32.totalorder %v550, %v1289
        %vm1301 = vcmp.eq.s32.totalorder %v551, %v1289
        %vm1302 = vcmp.eq.s32.totalorder %v552, %v1289
        %vm1303 = vcmp.eq.s32.totalorder %v553, %v1289
        %vm1304 = vcmp.eq.s32.totalorder %v554, %v1289
        %vm1305 = vcmp.eq.s32.totalorder %v555, %v1289
        %v1306 = vsel %vm1290, 1, 0
        %v1307 = vsel %vm1291, 1, 0
        %v1308 = vsel %vm1292, 1, 0
        %v1309 = vsel %vm1293, 1, 0
        %v1310 = vsel %vm1294, 1, 0
        %v1311 = vsel %vm1295, 1, 0
        %v1312 = vsel %vm1296, 1, 0
        %v1313 = vsel %vm1297, 1, 0
        %v1314 = vsel %vm1298, 1, 0
        %v1315 = vsel %vm1299, 1, 0
        %v1316 = vsel %vm1300, 1, 0
        %v1317 = vsel %vm1301, 1, 0
        %v1318 = vsel %vm1302, 1, 0
        %v1319 = vsel %vm1303, 1, 0
        %v1320 = vsel %vm1304, 1, 0
        %v1321 = vsel %vm1305, 1, 0
        %v1322 = vcvt.s32.f32 %v1306
        %v1323 = vcvt.s32.f32 %v1307
        %v1324 = vcvt.s32.f32 %v1308
        %v1325 = vcvt.s32.f32 %v1309
        %v1326 = vcvt.s32.f32 %v1310
        %v1327 = vcvt.s32.f32 %v1311
        %v1328 = vcvt.s32.f32 %v1312
        %v1329 = vcvt.s32.f32 %v1313
        %v1330 = vcvt.s32.f32 %v1314
        %v1331 = vcvt.s32.f32 %v1315
        %v1332 = vcvt.s32.f32 %v1316
        %v1333 = vcvt.s32.f32 %v1317
        %v1334 = vcvt.s32.f32 %v1318
        %v1335 = vcvt.s32.f32 %v1319
        %v1336 = vcvt.s32.f32 %v1320
        %v1337 = vcvt.s32.f32 %v1321
        %1338 = vmatprep.subr.mxu0 0.0
        %1339 = vmatpush1.msra.mxu0 %v1322
        %1340 = vmatprep.subr.mxu0 0.0
        %1341 = vmatpush1.msra.mxu0 %v1323
        %1342 = vmatprep.subr.mxu0 0.0
        %1343 = vmatpush1.msra.mxu0 %v1324
        %1344 = vmatprep.subr.mxu0 0.0
        %1345 = vmatpush1.msra.mxu0 %v1325
        %1346 = vmatprep.subr.mxu0 0.0
        %1347 = vmatpush1.msra.mxu0 %v1326
        %1348 = vmatprep.subr.mxu0 0.0
        %1349 = vmatpush1.msra.mxu0 %v1327
        %1350 = vmatprep.subr.mxu0 0.0
        %1351 = vmatpush1.msra.mxu0 %v1328
        %1352 = vmatprep.subr.mxu0 0.0
        %1353 = vmatpush1.msra.mxu0 %v1329
        %1354 = vmatprep.subr.mxu0 0.0
        %1355 = vmatpush1.msra.mxu0 %v1330
        %1356 = vmatprep.subr.mxu0 0.0
        %1357 = vmatpush1.msra.mxu0 %v1331
        %1358 = vmatprep.subr.mxu0 0.0
        %1359 = vmatpush1.msra.mxu0 %v1332
        %1360 = vmatprep.subr.mxu0 0.0
        %1361 = vmatpush1.msra.mxu0 %v1333
        %1362 = vmatprep.subr.mxu0 0.0
        %1363 = vmatpush1.msra.mxu0 %v1334
        %1364 = vmatprep.subr.mxu0 0.0
        %1365 = vmatpush1.msra.mxu0 %v1335
        %1366 = vmatprep.subr.mxu0 0.0
        %1367 = vmatpush1.msra.mxu0 %v1336
        %1368 = vmatprep.subr.mxu0 0.0
        %1369 = vmatpush1.msra.mxu0 %v1337
        %1370 = vmatprep.subr.mxu0 0.0
        %1371 = vmatpush1.msra.mxu0 0.0
        %1372 = vmatprep.subr.mxu0 0.0
        %1373 = vmatpush1.msra.mxu0 0.0
        %1374 = vmatprep.subr.mxu0 0.0
        %1375 = vmatpush1.msra.mxu0 0.0
        %1376 = vmatprep.subr.mxu0 0.0
        %1377 = vmatpush1.msra.mxu0 0.0
        %1378 = vmatprep.subr.mxu0 0.0
        %1379 = vmatpush1.msra.mxu0 0.0
        %1380 = vmatprep.subr.mxu0 0.0
        %1381 = vmatpush1.msra.mxu0 0.0
        %1382 = vmatprep.subr.mxu0 0.0
        %1383 = vmatpush1.msra.mxu0 0.0
        %1384 = vmatprep.subr.mxu0 0.0
        %1385 = vmatpush1.msra.mxu0 0.0
        %1386 = vmatprep.subr.mxu0 0.0
        %1387 = vmatpush1.msra.mxu0 0.0
        %1388 = vmatprep.subr.mxu0 0.0
        %1389 = vmatpush1.msra.mxu0 0.0
        %1390 = vmatprep.subr.mxu0 0.0
        %1391 = vmatpush1.msra.mxu0 0.0
        %1392 = vmatprep.subr.mxu0 0.0
        %1393 = vmatpush1.msra.mxu0 0.0
        %1394 = vmatprep.subr.mxu0 0.0
        %1395 = vmatpush1.msra.mxu0 0.0
        %1396 = vmatprep.subr.mxu0 0.0
        %1397 = vmatpush1.msra.mxu0 0.0
        %1398 = vmatprep.subr.mxu0 0.0
        %1399 = vmatpush1.msra.mxu0 0.0
        %1400 = vmatprep.subr.mxu0 0.0
        %1401 = vmatpush1.msra.mxu0 0.0
        %1402 = vmatprep.mubr.f32.mxu0 0.0
        %1403 = vmatmul.mubr.f32.gmra.mrb[0].mxu0 %v1023
        %v1404 = vpop.f32.mrb[0].mxu0
        %v1405 = vadd.f32 0.0, %v1404
        %v1406 = vpop.f32.mrb[0].mxu0
        %1407 = vdwg.mxu0
        %v1409 = vsel %vm377, %v304, 0
        %1411 = vmatprep.subr.mxu0 0.0
        %1412 = vmatpush1.msra.mxu0 %v1405
        %1413 = vmatprep.subr.mxu0 0.0
        %1414 = vmatpush1.msra.mxu0 0.0
        %1415 = vmatprep.subr.mxu0 0.0
        %1416 = vmatpush1.msra.mxu0 0.0
        %1417 = vmatprep.subr.mxu0 0.0
        %1418 = vmatpush1.msra.mxu0 0.0
        %1419 = vmatprep.subr.mxu0 0.0
        %1420 = vmatpush1.msra.mxu0 0.0
        %1421 = vmatprep.subr.mxu0 0.0
        %1422 = vmatpush1.msra.mxu0 0.0
        %1423 = vmatprep.subr.mxu0 0.0
        %1424 = vmatpush1.msra.mxu0 0.0
        %1425 = vmatprep.subr.mxu0 0.0
        %1426 = vmatpush1.msra.mxu0 0.0
        %1427 = vmatprep.subr.mxu0 0.0
        %1428 = vmatpush1.msra.mxu0 0.0
        %1429 = vmatprep.subr.mxu0 0.0
        %1430 = vmatpush1.msra.mxu0 0.0
        %1431 = vmatprep.subr.mxu0 0.0
        %1432 = vmatpush1.msra.mxu0 0.0
        %1433 = vmatprep.subr.mxu0 0.0
        %1434 = vmatpush1.msra.mxu0 0.0
        %1435 = vmatprep.subr.mxu0 0.0
        %1436 = vmatpush1.msra.mxu0 0.0
        %1437 = vmatprep.subr.mxu0 0.0
        %1438 = vmatpush1.msra.mxu0 0.0
        %1439 = vmatprep.subr.mxu0 0.0
        %1440 = vmatpush1.msra.mxu0 0.0
        %1441 = vmatprep.subr.mxu0 0.0
        %1442 = vmatpush1.msra.mxu0 0.0
        %1443 = vmatprep.subr.mxu0 0.0
        %1444 = vmatpush1.msra.mxu0 0.0
        %1445 = vmatprep.subr.mxu0 0.0
        %1446 = vmatpush1.msra.mxu0 0.0
        %1447 = vmatprep.subr.mxu0 0.0
        %1448 = vmatpush1.msra.mxu0 0.0
        %1449 = vmatprep.subr.mxu0 0.0
        %1450 = vmatpush1.msra.mxu0 0.0
        %1451 = vmatprep.subr.mxu0 0.0
        %1452 = vmatpush1.msra.mxu0 0.0
        %1453 = vmatprep.subr.mxu0 0.0
        %1454 = vmatpush1.msra.mxu0 0.0
        %1455 = vmatprep.subr.mxu0 0.0
        %1456 = vmatpush1.msra.mxu0 0.0
        %1457 = vmatprep.subr.mxu0 0.0
        %1458 = vmatpush1.msra.mxu0 0.0
        %1459 = vmatprep.subr.mxu0 0.0
        %1460 = vmatpush1.msra.mxu0 0.0
        %1461 = vmatprep.subr.mxu0 0.0
        %1462 = vmatpush1.msra.mxu0 0.0
        %1463 = vmatprep.subr.mxu0 0.0
        %1464 = vmatpush1.msra.mxu0 0.0
        %1465 = vmatprep.subr.mxu0 0.0
        %1466 = vmatpush1.msra.mxu0 0.0
        %1467 = vmatprep.subr.mxu0 0.0
        %1468 = vmatpush1.msra.mxu0 0.0
        %1469 = vmatprep.subr.mxu0 0.0
        %1470 = vmatpush1.msra.mxu0 0.0
        %1471 = vmatprep.subr.mxu0 0.0
        %1472 = vmatpush1.msra.mxu0 0.0
        %1473 = vmatprep.subr.mxu0 0.0
        %1474 = vmatpush1.msra.mxu0 0.0
        %1475 = vmatprep.mubr.f32.mxu0 0.0
        %1476 = vmatmul.mubr.f32.gmra.mrb[0].mxu0 %v1409
        %v1477 = vpop.f32.mrb[0].mxu0
        %v1478 = vadd.f32 0.0, %v1477
        %v1479 = vpop.f32.mrb[0].mxu0
        %1480 = vdwg.mxu0
        %v1481 = vadd.f32 %v1286, %v1478
        %1483 = vset.pattern.permute.xlu0 0
        %1484 = vperm.xlu0 %1483, %v312
        %v1485 = vpop.permute.xlu0 %1484
        %v1487 = vadd.f32 %v1481, %v1485
        %v1488 = vmax.f32 %v491, 0.0
        %v1489 = vadd.s32 %v557, 4294967272
        %vm1490 = vcmp.eq.s32.totalorder %v540, %v1489
        %vm1491 = vcmp.eq.s32.totalorder %v541, %v1489
        %vm1492 = vcmp.eq.s32.totalorder %v542, %v1489
        %vm1493 = vcmp.eq.s32.totalorder %v543, %v1489
        %vm1494 = vcmp.eq.s32.totalorder %v544, %v1489
        %vm1495 = vcmp.eq.s32.totalorder %v545, %v1489
        %vm1496 = vcmp.eq.s32.totalorder %v546, %v1489
        %vm1497 = vcmp.eq.s32.totalorder %v547, %v1489
        %vm1498 = vcmp.eq.s32.totalorder %v548, %v1489
        %vm1499 = vcmp.eq.s32.totalorder %v549, %v1489
        %vm1500 = vcmp.eq.s32.totalorder %v550, %v1489
        %vm1501 = vcmp.eq.s32.totalorder %v551, %v1489
        %vm1502 = vcmp.eq.s32.totalorder %v552, %v1489
        %vm1503 = vcmp.eq.s32.totalorder %v553, %v1489
        %vm1504 = vcmp.eq.s32.totalorder %v554, %v1489
        %vm1505 = vcmp.eq.s32.totalorder %v555, %v1489
        %v1506 = vsel %vm1490, 1, 0
        %v1507 = vsel %vm1491, 1, 0
        %v1508 = vsel %vm1492, 1, 0
        %v1509 = vsel %vm1493, 1, 0
        %v1510 = vsel %vm1494, 1, 0
        %v1511 = vsel %vm1495, 1, 0
        %v1512 = vsel %vm1496, 1, 0
        %v1513 = vsel %vm1497, 1, 0
        %v1514 = vsel %vm1498, 1, 0
        %v1515 = vsel %vm1499, 1, 0
        %v1516 = vsel %vm1500, 1, 0
        %v1517 = vsel %vm1501, 1, 0
        %v1518 = vsel %vm1502, 1, 0
        %v1519 = vsel %vm1503, 1, 0
        %v1520 = vsel %vm1504, 1, 0
        %v1521 = vsel %vm1505, 1, 0
        %v1522 = vcvt.s32.f32 %v1506
        %v1523 = vcvt.s32.f32 %v1507
        %v1524 = vcvt.s32.f32 %v1508
        %v1525 = vcvt.s32.f32 %v1509
        %v1526 = vcvt.s32.f32 %v1510
        %v1527 = vcvt.s32.f32 %v1511
        %v1528 = vcvt.s32.f32 %v1512
        %v1529 = vcvt.s32.f32 %v1513
        %v1530 = vcvt.s32.f32 %v1514
        %v1531 = vcvt.s32.f32 %v1515
        %v1532 = vcvt.s32.f32 %v1516
        %v1533 = vcvt.s32.f32 %v1517
        %v1534 = vcvt.s32.f32 %v1518
        %v1535 = vcvt.s32.f32 %v1519
        %v1536 = vcvt.s32.f32 %v1520
        %v1537 = vcvt.s32.f32 %v1521
        %1538 = vmatprep.subr.mxu0 0.0
        %1539 = vmatpush1.msra.mxu0 %v1522
        %1540 = vmatprep.subr.mxu0 0.0
        %1541 = vmatpush1.msra.mxu0 %v1523
        %1542 = vmatprep.subr.mxu0 0.0
        %1543 = vmatpush1.msra.mxu0 %v1524
        %1544 = vmatprep.subr.mxu0 0.0
        %1545 = vmatpush1.msra.mxu0 %v1525
        %1546 = vmatprep.subr.mxu0 0.0
        %1547 = vmatpush1.msra.mxu0 %v1526
        %1548 = vmatprep.subr.mxu0 0.0
        %1549 = vmatpush1.msra.mxu0 %v1527
        %1550 = vmatprep.subr.mxu0 0.0
        %1551 = vmatpush1.msra.mxu0 %v1528
        %1552 = vmatprep.subr.mxu0 0.0
        %1553 = vmatpush1.msra.mxu0 %v1529
        %1554 = vmatprep.subr.mxu0 0.0
        %1555 = vmatpush1.msra.mxu0 %v1530
        %1556 = vmatprep.subr.mxu0 0.0
        %1557 = vmatpush1.msra.mxu0 %v1531
        %1558 = vmatprep.subr.mxu0 0.0
        %1559 = vmatpush1.msra.mxu0 %v1532
        %1560 = vmatprep.subr.mxu0 0.0
        %1561 = vmatpush1.msra.mxu0 %v1533
        %1562 = vmatprep.subr.mxu0 0.0
        %1563 = vmatpush1.msra.mxu0 %v1534
        %1564 = vmatprep.subr.mxu0 0.0
        %1565 = vmatpush1.msra.mxu0 %v1535
        %1566 = vmatprep.subr.mxu0 0.0
        %1567 = vmatpush1.msra.mxu0 %v1536
        %1568 = vmatprep.subr.mxu0 0.0
        %1569 = vmatpush1.msra.mxu0 %v1537
        %1570 = vmatprep.subr.mxu0 0.0
        %1571 = vmatpush1.msra.mxu0 0.0
        %1572 = vmatprep.subr.mxu0 0.0
        %1573 = vmatpush1.msra.mxu0 0.0
        %1574 = vmatprep.subr.mxu0 0.0
        %1575 = vmatpush1.msra.mxu0 0.0
        %1576 = vmatprep.subr.mxu0 0.0
        %1577 = vmatpush1.msra.mxu0 0.0
        %1578 = vmatprep.subr.mxu0 0.0
        %1579 = vmatpush1.msra.mxu0 0.0
        %1580 = vmatprep.subr.mxu0 0.0
        %1581 = vmatpush1.msra.mxu0 0.0
        %1582 = vmatprep.subr.mxu0 0.0
        %1583 = vmatpush1.msra.mxu0 0.0
        %1584 = vmatprep.subr.mxu0 0.0
        %1585 = vmatpush1.msra.mxu0 0.0
        %1586 = vmatprep.subr.mxu0 0.0
        %1587 = vmatpush1.msra.mxu0 0.0
        %1588 = vmatprep.subr.mxu0 0.0
        %1589 = vmatpush1.msra.mxu0 0.0
        %1590 = vmatprep.subr.mxu0 0.0
        %1591 = vmatpush1.msra.mxu0 0.0
        %1592 = vmatprep.subr.mxu0 0.0
        %1593 = vmatpush1.msra.mxu0 0.0
        %1594 = vmatprep.subr.mxu0 0.0
        %1595 = vmatpush1.msra.mxu0 0.0
        %1596 = vmatprep.subr.mxu0 0.0
        %1597 = vmatpush1.msra.mxu0 0.0
        %1598 = vmatprep.subr.mxu0 0.0
        %1599 = vmatpush1.msra.mxu0 0.0
        %1600 = vmatprep.subr.mxu0 0.0
        %1601 = vmatpush1.msra.mxu0 0.0
        %1602 = vmatprep.mubr.f32.mxu0 0.0
        %1603 = vmatmul.mubr.f32.gmra.mrb[0].mxu0 %v1488
        %v1604 = vpop.f32.mrb[0].mxu0
        %v1605 = vadd.f32 0.0, %v1604
        %v1606 = vpop.f32.mrb[0].mxu0
        %1607 = vdwg.mxu0
        %v1609 = vsel %vm377, %v306, 0
        %1611 = vmatprep.subr.mxu0 0.0
        %1612 = vmatpush1.msra.mxu0 %v1488
        %1613 = vmatprep.subr.mxu0 0.0
        %1614 = vmatpush1.msra.mxu0 0.0
        %1615 = vmatprep.subr.mxu0 0.0
        %1616 = vmatpush1.msra.mxu0 0.0
        %1617 = vmatprep.subr.mxu0 0.0
        %1618 = vmatpush1.msra.mxu0 0.0
        %1619 = vmatprep.subr.mxu0 0.0
        %1620 = vmatpush1.msra.mxu0 0.0
        %1621 = vmatprep.subr.mxu0 0.0
        %1622 = vmatpush1.msra.mxu0 0.0
        %1623 = vmatprep.subr.mxu0 0.0
        %1624 = vmatpush1.msra.mxu0 0.0
        %1625 = vmatprep.subr.mxu0 0.0
        %1626 = vmatpush1.msra.mxu0 0.0
        %1627 = vmatprep.subr.mxu0 0.0
        %1628 = vmatpush1.msra.mxu0 0.0
        %1629 = vmatprep.subr.mxu0 0.0
        %1630 = vmatpush1.msra.mxu0 0.0
        %1631 = vmatprep.subr.mxu0 0.0
        %1632 = vmatpush1.msra.mxu0 0.0
        %1633 = vmatprep.subr.mxu0 0.0
        %1634 = vmatpush1.msra.mxu0 0.0
        %1635 = vmatprep.subr.mxu0 0.0
        %1636 = vmatpush1.msra.mxu0 0.0
        %1637 = vmatprep.subr.mxu0 0.0
        %1638 = vmatpush1.msra.mxu0 0.0
        %1639 = vmatprep.subr.mxu0 0.0
        %1640 = vmatpush1.msra.mxu0 0.0
        %1641 = vmatprep.subr.mxu0 0.0
        %1642 = vmatpush1.msra.mxu0 0.0
        %1643 = vmatprep.subr.mxu0 0.0
        %1644 = vmatpush1.msra.mxu0 0.0
        %1645 = vmatprep.subr.mxu0 0.0
        %1646 = vmatpush1.msra.mxu0 0.0
        %1647 = vmatprep.subr.mxu0 0.0
        %1648 = vmatpush1.msra.mxu0 0.0
        %1649 = vmatprep.subr.mxu0 0.0
        %1650 = vmatpush1.msra.mxu0 0.0
        %1651 = vmatprep.subr.mxu0 0.0
        %1652 = vmatpush1.msra.mxu0 0.0
        %1653 = vmatprep.subr.mxu0 0.0
        %1654 = vmatpush1.msra.mxu0 0.0
        %1655 = vmatprep.subr.mxu0 0.0
        %1656 = vmatpush1.msra.mxu0 0.0
        %1657 = vmatprep.subr.mxu0 0.0
        %1658 = vmatpush1.msra.mxu0 0.0
        %1659 = vmatprep.subr.mxu0 0.0
        %1660 = vmatpush1.msra.mxu0 0.0
        %1661 = vmatprep.subr.mxu0 0.0
        %1662 = vmatpush1.msra.mxu0 0.0
        %1663 = vmatprep.subr.mxu0 0.0
        %1664 = vmatpush1.msra.mxu0 0.0
        %1665 = vmatprep.subr.mxu0 0.0
        %1666 = vmatpush1.msra.mxu0 0.0
        %1667 = vmatprep.subr.mxu0 0.0
        %1668 = vmatpush1.msra.mxu0 0.0
        %1669 = vmatprep.subr.mxu0 0.0
        %1670 = vmatpush1.msra.mxu0 0.0
        %1671 = vmatprep.subr.mxu0 0.0
        %1672 = vmatpush1.msra.mxu0 0.0
        %1673 = vmatprep.subr.mxu0 0.0
        %1674 = vmatpush1.msra.mxu0 0.0
        %1675 = vmatprep.mubr.f32.mxu0 0.0
        %1676 = vmatmul.mubr.f32.gmra.mrb[0].mxu0 %v1609
        %v1677 = vpop.f32.mrb[0].mxu0
        %v1678 = vadd.f32 0.0, %v1677
        %v1679 = vpop.f32.mrb[0].mxu0
        %1680 = vdwg.mxu0
        %v1682 = vsel %vm377, %v305, 0
        %1684 = vmatprep.subr.mxu0 0.0
        %1685 = vmatpush1.msra.mxu0 %v1605
        %1686 = vmatprep.subr.mxu0 0.0
        %1687 = vmatpush1.msra.mxu0 0.0
        %1688 = vmatprep.subr.mxu0 0.0
        %1689 = vmatpush1.msra.mxu0 0.0
        %1690 = vmatprep.subr.mxu0 0.0
        %1691 = vmatpush1.msra.mxu0 0.0
        %1692 = vmatprep.subr.mxu0 0.0
        %1693 = vmatpush1.msra.mxu0 0.0
        %1694 = vmatprep.subr.mxu0 0.0
        %1695 = vmatpush1.msra.mxu0 0.0
        %1696 = vmatprep.subr.mxu0 0.0
        %1697 = vmatpush1.msra.mxu0 0.0
        %1698 = vmatprep.subr.mxu0 0.0
        %1699 = vmatpush1.msra.mxu0 0.0
        %1700 = vmatprep.subr.mxu0 0.0
        %1701 = vmatpush1.msra.mxu0 0.0
        %1702 = vmatprep.subr.mxu0 0.0
        %1703 = vmatpush1.msra.mxu0 0.0
        %1704 = vmatprep.subr.mxu0 0.0
        %1705 = vmatpush1.msra.mxu0 0.0
        %1706 = vmatprep.subr.mxu0 0.0
        %1707 = vmatpush1.msra.mxu0 0.0
        %1708 = vmatprep.subr.mxu0 0.0
        %1709 = vmatpush1.msra.mxu0 0.0
        %1710 = vmatprep.subr.mxu0 0.0
        %1711 = vmatpush1.msra.mxu0 0.0
        %1712 = vmatprep.subr.mxu0 0.0
        %1713 = vmatpush1.msra.mxu0 0.0
        %1714 = vmatprep.subr.mxu0 0.0
        %1715 = vmatpush1.msra.mxu0 0.0
        %1716 = vmatprep.subr.mxu0 0.0
        %1717 = vmatpush1.msra.mxu0 0.0
        %1718 = vmatprep.subr.mxu0 0.0
        %1719 = vmatpush1.msra.mxu0 0.0
        %1720 = vmatprep.subr.mxu0 0.0
        %1721 = vmatpush1.msra.mxu0 0.0
        %1722 = vmatprep.subr.mxu0 0.0
        %1723 = vmatpush1.msra.mxu0 0.0
        %1724 = vmatprep.subr.mxu0 0.0
        %1725 = vmatpush1.msra.mxu0 0.0
        %1726 = vmatprep.subr.mxu0 0.0
        %1727 = vmatpush1.msra.mxu0 0.0
        %1728 = vmatprep.subr.mxu0 0.0
        %1729 = vmatpush1.msra.mxu0 0.0
        %1730 = vmatprep.subr.mxu0 0.0
        %1731 = vmatpush1.msra.mxu0 0.0
        %1732 = vmatprep.subr.mxu0 0.0
        %1733 = vmatpush1.msra.mxu0 0.0
        %1734 = vmatprep.subr.mxu0 0.0
        %1735 = vmatpush1.msra.mxu0 0.0
        %1736 = vmatprep.subr.mxu0 0.0
        %1737 = vmatpush1.msra.mxu0 0.0
        %1738 = vmatprep.subr.mxu0 0.0
        %1739 = vmatpush1.msra.mxu0 0.0
        %1740 = vmatprep.subr.mxu0 0.0
        %1741 = vmatpush1.msra.mxu0 0.0
        %1742 = vmatprep.subr.mxu0 0.0
        %1743 = vmatpush1.msra.mxu0 0.0
        %1744 = vmatprep.subr.mxu0 0.0
        %1745 = vmatpush1.msra.mxu0 0.0
        %1746 = vmatprep.subr.mxu0 0.0
        %1747 = vmatpush1.msra.mxu0 0.0
        %1748 = vmatprep.mubr.f32.mxu0 0.0
        %1749 = vmatmul.mubr.f32.gmra.mrb[0].mxu0 %v1682
        %v1750 = vpop.f32.mrb[0].mxu0
        %v1751 = vadd.f32 %v1678, %v1750
        %v1752 = vpop.f32.mrb[0].mxu0
        %1753 = vdwg.mxu0
        %v1754 = vadd.s32 %v557, 24
        %vm1755 = vcmp.eq.s32.totalorder %v540, %v1754
        %vm1756 = vcmp.eq.s32.totalorder %v541, %v1754
        %vm1757 = vcmp.eq.s32.totalorder %v542, %v1754
        %vm1758 = vcmp.eq.s32.totalorder %v543, %v1754
        %vm1759 = vcmp.eq.s32.totalorder %v544, %v1754
        %vm1760 = vcmp.eq.s32.totalorder %v545, %v1754
        %vm1761 = vcmp.eq.s32.totalorder %v546, %v1754
        %vm1762 = vcmp.eq.s32.totalorder %v547, %v1754
        %vm1763 = vcmp.eq.s32.totalorder %v548, %v1754
        %vm1764 = vcmp.eq.s32.totalorder %v549, %v1754
        %vm1765 = vcmp.eq.s32.totalorder %v550, %v1754
        %vm1766 = vcmp.eq.s32.totalorder %v551, %v1754
        %vm1767 = vcmp.eq.s32.totalorder %v552, %v1754
        %vm1768 = vcmp.eq.s32.totalorder %v553, %v1754
        %vm1769 = vcmp.eq.s32.totalorder %v554, %v1754
        %vm1770 = vcmp.eq.s32.totalorder %v555, %v1754
        %v1771 = vsel %vm1755, 1, 0
        %v1772 = vsel %vm1756, 1, 0
        %v1773 = vsel %vm1757, 1, 0
        %v1774 = vsel %vm1758, 1, 0
        %v1775 = vsel %vm1759, 1, 0
        %v1776 = vsel %vm1760, 1, 0
        %v1777 = vsel %vm1761, 1, 0
        %v1778 = vsel %vm1762, 1, 0
        %v1779 = vsel %vm1763, 1, 0
        %v1780 = vsel %vm1764, 1, 0
        %v1781 = vsel %vm1765, 1, 0
        %v1782 = vsel %vm1766, 1, 0
        %v1783 = vsel %vm1767, 1, 0
        %v1784 = vsel %vm1768, 1, 0
        %v1785 = vsel %vm1769, 1, 0
        %v1786 = vsel %vm1770, 1, 0
        %v1787 = vcvt.s32.f32 %v1771
        %v1788 = vcvt.s32.f32 %v1772
        %v1789 = vcvt.s32.f32 %v1773
        %v1790 = vcvt.s32.f32 %v1774
        %v1791 = vcvt.s32.f32 %v1775
        %v1792 = vcvt.s32.f32 %v1776
        %v1793 = vcvt.s32.f32 %v1777
        %v1794 = vcvt.s32.f32 %v1778
        %v1795 = vcvt.s32.f32 %v1779
        %v1796 = vcvt.s32.f32 %v1780
        %v1797 = vcvt.s32.f32 %v1781
        %v1798 = vcvt.s32.f32 %v1782
        %v1799 = vcvt.s32.f32 %v1783
        %v1800 = vcvt.s32.f32 %v1784
        %v1801 = vcvt.s32.f32 %v1785
        %v1802 = vcvt.s32.f32 %v1786
        %1803 = vmatprep.subr.mxu0 0.0
        %1804 = vmatpush1.msra.mxu0 %v1787
        %1805 = vmatprep.subr.mxu0 0.0
        %1806 = vmatpush1.msra.mxu0 %v1788
        %1807 = vmatprep.subr.mxu0 0.0
        %1808 = vmatpush1.msra.mxu0 %v1789
        %1809 = vmatprep.subr.mxu0 0.0
        %1810 = vmatpush1.msra.mxu0 %v1790
        %1811 = vmatprep.subr.mxu0 0.0
        %1812 = vmatpush1.msra.mxu0 %v1791
        %1813 = vmatprep.subr.mxu0 0.0
        %1814 = vmatpush1.msra.mxu0 %v1792
        %1815 = vmatprep.subr.mxu0 0.0
        %1816 = vmatpush1.msra.mxu0 %v1793
        %1817 = vmatprep.subr.mxu0 0.0
        %1818 = vmatpush1.msra.mxu0 %v1794
        %1819 = vmatprep.subr.mxu0 0.0
        %1820 = vmatpush1.msra.mxu0 %v1795
        %1821 = vmatprep.subr.mxu0 0.0
        %1822 = vmatpush1.msra.mxu0 %v1796
        %1823 = vmatprep.subr.mxu0 0.0
        %1824 = vmatpush1.msra.mxu0 %v1797
        %1825 = vmatprep.subr.mxu0 0.0
        %1826 = vmatpush1.msra.mxu0 %v1798
        %1827 = vmatprep.subr.mxu0 0.0
        %1828 = vmatpush1.msra.mxu0 %v1799
        %1829 = vmatprep.subr.mxu0 0.0
        %1830 = vmatpush1.msra.mxu0 %v1800
        %1831 = vmatprep.subr.mxu0 0.0
        %1832 = vmatpush1.msra.mxu0 %v1801
        %1833 = vmatprep.subr.mxu0 0.0
        %1834 = vmatpush1.msra.mxu0 %v1802
        %1835 = vmatprep.subr.mxu0 0.0
        %1836 = vmatpush1.msra.mxu0 0.0
        %1837 = vmatprep.subr.mxu0 0.0
        %1838 = vmatpush1.msra.mxu0 0.0
        %1839 = vmatprep.subr.mxu0 0.0
        %1840 = vmatpush1.msra.mxu0 0.0
        %1841 = vmatprep.subr.mxu0 0.0
        %1842 = vmatpush1.msra.mxu0 0.0
        %1843 = vmatprep.subr.mxu0 0.0
        %1844 = vmatpush1.msra.mxu0 0.0
        %1845 = vmatprep.subr.mxu0 0.0
        %1846 = vmatpush1.msra.mxu0 0.0
        %1847 = vmatprep.subr.mxu0 0.0
        %1848 = vmatpush1.msra.mxu0 0.0
        %1849 = vmatprep.subr.mxu0 0.0
        %1850 = vmatpush1.msra.mxu0 0.0
        %1851 = vmatprep.subr.mxu0 0.0
        %1852 = vmatpush1.msra.mxu0 0.0
        %1853 = vmatprep.subr.mxu0 0.0
        %1854 = vmatpush1.msra.mxu0 0.0
        %1855 = vmatprep.subr.mxu0 0.0
        %1856 = vmatpush1.msra.mxu0 0.0
        %1857 = vmatprep.subr.mxu0 0.0
        %1858 = vmatpush1.msra.mxu0 0.0
        %1859 = vmatprep.subr.mxu0 0.0
        %1860 = vmatpush1.msra.mxu0 0.0
        %1861 = vmatprep.subr.mxu0 0.0
        %1862 = vmatpush1.msra.mxu0 0.0
        %1863 = vmatprep.subr.mxu0 0.0
        %1864 = vmatpush1.msra.mxu0 0.0
        %1865 = vmatprep.subr.mxu0 0.0
        %1866 = vmatpush1.msra.mxu0 0.0
        %1867 = vmatprep.mubr.f32.mxu0 0.0
        %1868 = vmatmul.mubr.f32.gmra.mrb[0].mxu0 %v1488
        %v1869 = vpop.f32.mrb[0].mxu0
        %v1870 = vadd.f32 0.0, %v1869
        %v1871 = vpop.f32.mrb[0].mxu0
        %1872 = vdwg.mxu0
        %v1874 = vsel %vm377, %v307, 0
        %1876 = vmatprep.subr.mxu0 0.0
        %1877 = vmatpush1.msra.mxu0 %v1870
        %1878 = vmatprep.subr.mxu0 0.0
        %1879 = vmatpush1.msra.mxu0 0.0
        %1880 = vmatprep.subr.mxu0 0.0
        %1881 = vmatpush1.msra.mxu0 0.0
        %1882 = vmatprep.subr.mxu0 0.0
        %1883 = vmatpush1.msra.mxu0 0.0
        %1884 = vmatprep.subr.mxu0 0.0
        %1885 = vmatpush1.msra.mxu0 0.0
        %1886 = vmatprep.subr.mxu0 0.0
        %1887 = vmatpush1.msra.mxu0 0.0
        %1888 = vmatprep.subr.mxu0 0.0
        %1889 = vmatpush1.msra.mxu0 0.0
        %1890 = vmatprep.subr.mxu0 0.0
        %1891 = vmatpush1.msra.mxu0 0.0
        %1892 = vmatprep.subr.mxu0 0.0
        %1893 = vmatpush1.msra.mxu0 0.0
        %1894 = vmatprep.subr.mxu0 0.0
        %1895 = vmatpush1.msra.mxu0 0.0
        %1896 = vmatprep.subr.mxu0 0.0
        %1897 = vmatpush1.msra.mxu0 0.0
        %1898 = vmatprep.subr.mxu0 0.0
        %1899 = vmatpush1.msra.mxu0 0.0
        %1900 = vmatprep.subr.mxu0 0.0
        %1901 = vmatpush1.msra.mxu0 0.0
        %1902 = vmatprep.subr.mxu0 0.0
        %1903 = vmatpush1.msra.mxu0 0.0
        %1904 = vmatprep.subr.mxu0 0.0
        %1905 = vmatpush1.msra.mxu0 0.0
        %1906 = vmatprep.subr.mxu0 0.0
        %1907 = vmatpush1.msra.mxu0 0.0
        %1908 = vmatprep.subr.mxu0 0.0
        %1909 = vmatpush1.msra.mxu0 0.0
        %1910 = vmatprep.subr.mxu0 0.0
        %1911 = vmatpush1.msra.mxu0 0.0
        %1912 = vmatprep.subr.mxu0 0.0
        %1913 = vmatpush1.msra.mxu0 0.0
        %1914 = vmatprep.subr.mxu0 0.0
        %1915 = vmatpush1.msra.mxu0 0.0
        %1916 = vmatprep.subr.mxu0 0.0
        %1917 = vmatpush1.msra.mxu0 0.0
        %1918 = vmatprep.subr.mxu0 0.0
        %1919 = vmatpush1.msra.mxu0 0.0
        %1920 = vmatprep.subr.mxu0 0.0
        %1921 = vmatpush1.msra.mxu0 0.0
        %1922 = vmatprep.subr.mxu0 0.0
        %1923 = vmatpush1.msra.mxu0 0.0
        %1924 = vmatprep.subr.mxu0 0.0
        %1925 = vmatpush1.msra.mxu0 0.0
        %1926 = vmatprep.subr.mxu0 0.0
        %1927 = vmatpush1.msra.mxu0 0.0
        %1928 = vmatprep.subr.mxu0 0.0
        %1929 = vmatpush1.msra.mxu0 0.0
        %1930 = vmatprep.subr.mxu0 0.0
        %1931 = vmatpush1.msra.mxu0 0.0
        %1932 = vmatprep.subr.mxu0 0.0
        %1933 = vmatpush1.msra.mxu0 0.0
        %1934 = vmatprep.subr.mxu0 0.0
        %1935 = vmatpush1.msra.mxu0 0.0
        %1936 = vmatprep.subr.mxu0 0.0
        %1937 = vmatpush1.msra.mxu0 0.0
        %1938 = vmatprep.subr.mxu0 0.0
        %1939 = vmatpush1.msra.mxu0 0.0
        %1940 = vmatprep.mubr.f32.mxu0 0.0
        %1941 = vmatmul.mubr.f32.gmra.mrb[0].mxu0 %v1874
        %v1942 = vpop.f32.mrb[0].mxu0
        %v1943 = vadd.f32 0.0, %v1942
        %v1944 = vpop.f32.mrb[0].mxu0
        %1945 = vdwg.mxu0
        %v1946 = vadd.f32 %v1751, %v1943
        %1948 = vset.pattern.permute.xlu0 0
        %1949 = vperm.xlu0 %1948, %v313
        %v1950 = vpop.permute.xlu0 %1949
        %v1952 = vadd.f32 %v1946, %v1950
        %v1953 = vmax.f32 %v496, 0.0
        %v1954 = vadd.s32 %v557, 4294967264
        %vm1955 = vcmp.eq.s32.totalorder %v540, %v1954
        %vm1956 = vcmp.eq.s32.totalorder %v541, %v1954
        %vm1957 = vcmp.eq.s32.totalorder %v542, %v1954
        %vm1958 = vcmp.eq.s32.totalorder %v543, %v1954
        %vm1959 = vcmp.eq.s32.totalorder %v544, %v1954
        %vm1960 = vcmp.eq.s32.totalorder %v545, %v1954
        %vm1961 = vcmp.eq.s32.totalorder %v546, %v1954
        %vm1962 = vcmp.eq.s32.totalorder %v547, %v1954
        %vm1963 = vcmp.eq.s32.totalorder %v548, %v1954
        %vm1964 = vcmp.eq.s32.totalorder %v549, %v1954
        %vm1965 = vcmp.eq.s32.totalorder %v550, %v1954
        %vm1966 = vcmp.eq.s32.totalorder %v551, %v1954
        %vm1967 = vcmp.eq.s32.totalorder %v552, %v1954
        %vm1968 = vcmp.eq.s32.totalorder %v553, %v1954
        %vm1969 = vcmp.eq.s32.totalorder %v554, %v1954
        %vm1970 = vcmp.eq.s32.totalorder %v555, %v1954
        %v1971 = vsel %vm1955, 1, 0
        %v1972 = vsel %vm1956, 1, 0
        %v1973 = vsel %vm1957, 1, 0
        %v1974 = vsel %vm1958, 1, 0
        %v1975 = vsel %vm1959, 1, 0
        %v1976 = vsel %vm1960, 1, 0
        %v1977 = vsel %vm1961, 1, 0
        %v1978 = vsel %vm1962, 1, 0
        %v1979 = vsel %vm1963, 1, 0
        %v1980 = vsel %vm1964, 1, 0
        %v1981 = vsel %vm1965, 1, 0
        %v1982 = vsel %vm1966, 1, 0
        %v1983 = vsel %vm1967, 1, 0
        %v1984 = vsel %vm1968, 1, 0
        %v1985 = vsel %vm1969, 1, 0
        %v1986 = vsel %vm1970, 1, 0
        %v1987 = vcvt.s32.f32 %v1971
        %v1988 = vcvt.s32.f32 %v1972
        %v1989 = vcvt.s32.f32 %v1973
        %v1990 = vcvt.s32.f32 %v1974
        %v1991 = vcvt.s32.f32 %v1975
        %v1992 = vcvt.s32.f32 %v1976
        %v1993 = vcvt.s32.f32 %v1977
        %v1994 = vcvt.s32.f32 %v1978
        %v1995 = vcvt.s32.f32 %v1979
        %v1996 = vcvt.s32.f32 %v1980
        %v1997 = vcvt.s32.f32 %v1981
        %v1998 = vcvt.s32.f32 %v1982
        %v1999 = vcvt.s32.f32 %v1983
        %v2000 = vcvt.s32.f32 %v1984
        %v2001 = vcvt.s32.f32 %v1985
        %v2002 = vcvt.s32.f32 %v1986
        %2003 = vmatprep.subr.mxu0 0.0
        %2004 = vmatpush1.msra.mxu0 %v1987
        %2005 = vmatprep.subr.mxu0 0.0
        %2006 = vmatpush1.msra.mxu0 %v1988
        %2007 = vmatprep.subr.mxu0 0.0
        %2008 = vmatpush1.msra.mxu0 %v1989
        %2009 = vmatprep.subr.mxu0 0.0
        %2010 = vmatpush1.msra.mxu0 %v1990
        %2011 = vmatprep.subr.mxu0 0.0
        %2012 = vmatpush1.msra.mxu0 %v1991
        %2013 = vmatprep.subr.mxu0 0.0
        %2014 = vmatpush1.msra.mxu0 %v1992
        %2015 = vmatprep.subr.mxu0 0.0
        %2016 = vmatpush1.msra.mxu0 %v1993
        %2017 = vmatprep.subr.mxu0 0.0
        %2018 = vmatpush1.msra.mxu0 %v1994
        %2019 = vmatprep.subr.mxu0 0.0
        %2020 = vmatpush1.msra.mxu0 %v1995
        %2021 = vmatprep.subr.mxu0 0.0
        %2022 = vmatpush1.msra.mxu0 %v1996
        %2023 = vmatprep.subr.mxu0 0.0
        %2024 = vmatpush1.msra.mxu0 %v1997
        %2025 = vmatprep.subr.mxu0 0.0
        %2026 = vmatpush1.msra.mxu0 %v1998
        %2027 = vmatprep.subr.mxu0 0.0
        %2028 = vmatpush1.msra.mxu0 %v1999
        %2029 = vmatprep.subr.mxu0 0.0
        %2030 = vmatpush1.msra.mxu0 %v2000
        %2031 = vmatprep.subr.mxu0 0.0
        %2032 = vmatpush1.msra.mxu0 %v2001
        %2033 = vmatprep.subr.mxu0 0.0
        %2034 = vmatpush1.msra.mxu0 %v2002
        %2035 = vmatprep.subr.mxu0 0.0
        %2036 = vmatpush1.msra.mxu0 0.0
        %2037 = vmatprep.subr.mxu0 0.0
        %2038 = vmatpush1.msra.mxu0 0.0
        %2039 = vmatprep.subr.mxu0 0.0
        %2040 = vmatpush1.msra.mxu0 0.0
        %2041 = vmatprep.subr.mxu0 0.0
        %2042 = vmatpush1.msra.mxu0 0.0
        %2043 = vmatprep.subr.mxu0 0.0
        %2044 = vmatpush1.msra.mxu0 0.0
        %2045 = vmatprep.subr.mxu0 0.0
        %2046 = vmatpush1.msra.mxu0 0.0
        %2047 = vmatprep.subr.mxu0 0.0
        %2048 = vmatpush1.msra.mxu0 0.0
        %2049 = vmatprep.subr.mxu0 0.0
        %2050 = vmatpush1.msra.mxu0 0.0
        %2051 = vmatprep.subr.mxu0 0.0
        %2052 = vmatpush1.msra.mxu0 0.0
        %2053 = vmatprep.subr.mxu0 0.0
        %2054 = vmatpush1.msra.mxu0 0.0
        %2055 = vmatprep.subr.mxu0 0.0
        %2056 = vmatpush1.msra.mxu0 0.0
        %2057 = vmatprep.subr.mxu0 0.0
        %2058 = vmatpush1.msra.mxu0 0.0
        %2059 = vmatprep.subr.mxu0 0.0
        %2060 = vmatpush1.msra.mxu0 0.0
        %2061 = vmatprep.subr.mxu0 0.0
        %2062 = vmatpush1.msra.mxu0 0.0
        %2063 = vmatprep.subr.mxu0 0.0
        %2064 = vmatpush1.msra.mxu0 0.0
        %2065 = vmatprep.subr.mxu0 0.0
        %2066 = vmatpush1.msra.mxu0 0.0
        %2067 = vmatprep.mubr.f32.mxu0 0.0
        %2068 = vmatmul.mubr.f32.gmra.mrb[0].mxu0 %v1953
        %v2069 = vpop.f32.mrb[0].mxu0
        %v2070 = vadd.f32 0.0, %v2069
        %v2071 = vpop.f32.mrb[0].mxu0
        %2072 = vdwg.mxu0
        %v2074 = vsel %vm377, %v309, 0
        %2076 = vmatprep.subr.mxu0 0.0
        %2077 = vmatpush1.msra.mxu0 %v1953
        %2078 = vmatprep.subr.mxu0 0.0
        %2079 = vmatpush1.msra.mxu0 0.0
        %2080 = vmatprep.subr.mxu0 0.0
        %2081 = vmatpush1.msra.mxu0 0.0
        %2082 = vmatprep.subr.mxu0 0.0
        %2083 = vmatpush1.msra.mxu0 0.0
        %2084 = vmatprep.subr.mxu0 0.0
        %2085 = vmatpush1.msra.mxu0 0.0
        %2086 = vmatprep.subr.mxu0 0.0
        %2087 = vmatpush1.msra.mxu0 0.0
        %2088 = vmatprep.subr.mxu0 0.0
        %2089 = vmatpush1.msra.mxu0 0.0
        %2090 = vmatprep.subr.mxu0 0.0
        %2091 = vmatpush1.msra.mxu0 0.0
        %2092 = vmatprep.subr.mxu0 0.0
        %2093 = vmatpush1.msra.mxu0 0.0
        %2094 = vmatprep.subr.mxu0 0.0
        %2095 = vmatpush1.msra.mxu0 0.0
        %2096 = vmatprep.subr.mxu0 0.0
        %2097 = vmatpush1.msra.mxu0 0.0
        %2098 = vmatprep.subr.mxu0 0.0
        %2099 = vmatpush1.msra.mxu0 0.0
        %2100 = vmatprep.subr.mxu0 0.0
        %2101 = vmatpush1.msra.mxu0 0.0
        %2102 = vmatprep.subr.mxu0 0.0
        %2103 = vmatpush1.msra.mxu0 0.0
        %2104 = vmatprep.subr.mxu0 0.0
        %2105 = vmatpush1.msra.mxu0 0.0
        %2106 = vmatprep.subr.mxu0 0.0
        %2107 = vmatpush1.msra.mxu0 0.0
        %2108 = vmatprep.subr.mxu0 0.0
        %2109 = vmatpush1.msra.mxu0 0.0
        %2110 = vmatprep.subr.mxu0 0.0
        %2111 = vmatpush1.msra.mxu0 0.0
        %2112 = vmatprep.subr.mxu0 0.0
        %2113 = vmatpush1.msra.mxu0 0.0
        %2114 = vmatprep.subr.mxu0 0.0
        %2115 = vmatpush1.msra.mxu0 0.0
        %2116 = vmatprep.subr.mxu0 0.0
        %2117 = vmatpush1.msra.mxu0 0.0
        %2118 = vmatprep.subr.mxu0 0.0
        %2119 = vmatpush1.msra.mxu0 0.0
        %2120 = vmatprep.subr.mxu0 0.0
        %2121 = vmatpush1.msra.mxu0 0.0
        %2122 = vmatprep.subr.mxu0 0.0
        %2123 = vmatpush1.msra.mxu0 0.0
        %2124 = vmatprep.subr.mxu0 0.0
        %2125 = vmatpush1.msra.mxu0 0.0
        %2126 = vmatprep.subr.mxu0 0.0
        %2127 = vmatpush1.msra.mxu0 0.0
        %2128 = vmatprep.subr.mxu0 0.0
        %2129 = vmatpush1.msra.mxu0 0.0
        %2130 = vmatprep.subr.mxu0 0.0
        %2131 = vmatpush1.msra.mxu0 0.0
        %2132 = vmatprep.subr.mxu0 0.0
        %2133 = vmatpush1.msra.mxu0 0.0
        %2134 = vmatprep.subr.mxu0 0.0
        %2135 = vmatpush1.msra.mxu0 0.0
        %2136 = vmatprep.subr.mxu0 0.0
        %2137 = vmatpush1.msra.mxu0 0.0
        %2138 = vmatprep.subr.mxu0 0.0
        %2139 = vmatpush1.msra.mxu0 0.0
        %2140 = vmatprep.mubr.f32.mxu0 0.0
        %2141 = vmatmul.mubr.f32.gmra.mrb[0].mxu0 %v2074
        %v2142 = vpop.f32.mrb[0].mxu0
        %v2143 = vadd.f32 0.0, %v2142
        %v2144 = vpop.f32.mrb[0].mxu0
        %2145 = vdwg.mxu0
        %v2147 = vsel %vm377, %v308, 0
        %2149 = vmatprep.subr.mxu0 0.0
        %2150 = vmatpush1.msra.mxu0 %v2070
        %2151 = vmatprep.subr.mxu0 0.0
        %2152 = vmatpush1.msra.mxu0 0.0
        %2153 = vmatprep.subr.mxu0 0.0
        %2154 = vmatpush1.msra.mxu0 0.0
        %2155 = vmatprep.subr.mxu0 0.0
        %2156 = vmatpush1.msra.mxu0 0.0
        %2157 = vmatprep.subr.mxu0 0.0
        %2158 = vmatpush1.msra.mxu0 0.0
        %2159 = vmatprep.subr.mxu0 0.0
        %2160 = vmatpush1.msra.mxu0 0.0
        %2161 = vmatprep.subr.mxu0 0.0
        %2162 = vmatpush1.msra.mxu0 0.0
        %2163 = vmatprep.subr.mxu0 0.0
        %2164 = vmatpush1.msra.mxu0 0.0
        %2165 = vmatprep.subr.mxu0 0.0
        %2166 = vmatpush1.msra.mxu0 0.0
        %2167 = vmatprep.subr.mxu0 0.0
        %2168 = vmatpush1.msra.mxu0 0.0
        %2169 = vmatprep.subr.mxu0 0.0
        %2170 = vmatpush1.msra.mxu0 0.0
        %2171 = vmatprep.subr.mxu0 0.0
        %2172 = vmatpush1.msra.mxu0 0.0
        %2173 = vmatprep.subr.mxu0 0.0
        %2174 = vmatpush1.msra.mxu0 0.0
        %2175 = vmatprep.subr.mxu0 0.0
        %2176 = vmatpush1.msra.mxu0 0.0
        %2177 = vmatprep.subr.mxu0 0.0
        %2178 = vmatpush1.msra.mxu0 0.0
        %2179 = vmatprep.subr.mxu0 0.0
        %2180 = vmatpush1.msra.mxu0 0.0
        %2181 = vmatprep.subr.mxu0 0.0
        %2182 = vmatpush1.msra.mxu0 0.0
        %2183 = vmatprep.subr.mxu0 0.0
        %2184 = vmatpush1.msra.mxu0 0.0
        %2185 = vmatprep.subr.mxu0 0.0
        %2186 = vmatpush1.msra.mxu0 0.0
        %2187 = vmatprep.subr.mxu0 0.0
        %2188 = vmatpush1.msra.mxu0 0.0
        %2189 = vmatprep.subr.mxu0 0.0
        %2190 = vmatpush1.msra.mxu0 0.0
        %2191 = vmatprep.subr.mxu0 0.0
        %2192 = vmatpush1.msra.mxu0 0.0
        %2193 = vmatprep.subr.mxu0 0.0
        %2194 = vmatpush1.msra.mxu0 0.0
        %2195 = vmatprep.subr.mxu0 0.0
        %2196 = vmatpush1.msra.mxu0 0.0
        %2197 = vmatprep.subr.mxu0 0.0
        %2198 = vmatpush1.msra.mxu0 0.0
        %2199 = vmatprep.subr.mxu0 0.0
        %2200 = vmatpush1.msra.mxu0 0.0
        %2201 = vmatprep.subr.mxu0 0.0
        %2202 = vmatpush1.msra.mxu0 0.0
        %2203 = vmatprep.subr.mxu0 0.0
        %2204 = vmatpush1.msra.mxu0 0.0
        %2205 = vmatprep.subr.mxu0 0.0
        %2206 = vmatpush1.msra.mxu0 0.0
        %2207 = vmatprep.subr.mxu0 0.0
        %2208 = vmatpush1.msra.mxu0 0.0
        %2209 = vmatprep.subr.mxu0 0.0
        %2210 = vmatpush1.msra.mxu0 0.0
        %2211 = vmatprep.subr.mxu0 0.0
        %2212 = vmatpush1.msra.mxu0 0.0
        %2213 = vmatprep.mubr.f32.mxu0 0.0
        %2214 = vmatmul.mubr.f32.gmra.mrb[0].mxu0 %v2147
        %v2215 = vpop.f32.mrb[0].mxu0
        %v2216 = vadd.f32 %v2143, %v2215
        %v2217 = vpop.f32.mrb[0].mxu0
        %2218 = vdwg.mxu0
        %v2219 = vadd.s32 %v557, 32
        %vm2220 = vcmp.eq.s32.totalorder %v540, %v2219
        %vm2221 = vcmp.eq.s32.totalorder %v541, %v2219
        %vm2222 = vcmp.eq.s32.totalorder %v542, %v2219
        %vm2223 = vcmp.eq.s32.totalorder %v543, %v2219
        %vm2224 = vcmp.eq.s32.totalorder %v544, %v2219
        %vm2225 = vcmp.eq.s32.totalorder %v545, %v2219
        %vm2226 = vcmp.eq.s32.totalorder %v546, %v2219
        %vm2227 = vcmp.eq.s32.totalorder %v547, %v2219
        %vm2228 = vcmp.eq.s32.totalorder %v548, %v2219
        %vm2229 = vcmp.eq.s32.totalorder %v549, %v2219
        %vm2230 = vcmp.eq.s32.totalorder %v550, %v2219
        %vm2231 = vcmp.eq.s32.totalorder %v551, %v2219
        %vm2232 = vcmp.eq.s32.totalorder %v552, %v2219
        %vm2233 = vcmp.eq.s32.totalorder %v553, %v2219
        %vm2234 = vcmp.eq.s32.totalorder %v554, %v2219
        %vm2235 = vcmp.eq.s32.totalorder %v555, %v2219
        %v2236 = vsel %vm2220, 1, 0
        %v2237 = vsel %vm2221, 1, 0
        %v2238 = vsel %vm2222, 1, 0
        %v2239 = vsel %vm2223, 1, 0
        %v2240 = vsel %vm2224, 1, 0
        %v2241 = vsel %vm2225, 1, 0
        %v2242 = vsel %vm2226, 1, 0
        %v2243 = vsel %vm2227, 1, 0
        %v2244 = vsel %vm2228, 1, 0
        %v2245 = vsel %vm2229, 1, 0
        %v2246 = vsel %vm2230, 1, 0
        %v2247 = vsel %vm2231, 1, 0
        %v2248 = vsel %vm2232, 1, 0
        %v2249 = vsel %vm2233, 1, 0
        %v2250 = vsel %vm2234, 1, 0
        %v2251 = vsel %vm2235, 1, 0
        %v2252 = vcvt.s32.f32 %v2236
        %v2253 = vcvt.s32.f32 %v2237
        %v2254 = vcvt.s32.f32 %v2238
        %v2255 = vcvt.s32.f32 %v2239
        %v2256 = vcvt.s32.f32 %v2240
        %v2257 = vcvt.s32.f32 %v2241
        %v2258 = vcvt.s32.f32 %v2242
        %v2259 = vcvt.s32.f32 %v2243
        %v2260 = vcvt.s32.f32 %v2244
        %v2261 = vcvt.s32.f32 %v2245
        %v2262 = vcvt.s32.f32 %v2246
        %v2263 = vcvt.s32.f32 %v2247
        %v2264 = vcvt.s32.f32 %v2248
        %v2265 = vcvt.s32.f32 %v2249
        %v2266 = vcvt.s32.f32 %v2250
        %v2267 = vcvt.s32.f32 %v2251
        %2268 = vmatprep.subr.mxu0 0.0
        %2269 = vmatpush1.msra.mxu0 %v2252
        %2270 = vmatprep.subr.mxu0 0.0
        %2271 = vmatpush1.msra.mxu0 %v2253
        %2272 = vmatprep.subr.mxu0 0.0
        %2273 = vmatpush1.msra.mxu0 %v2254
        %2274 = vmatprep.subr.mxu0 0.0
        %2275 = vmatpush1.msra.mxu0 %v2255
        %2276 = vmatprep.subr.mxu0 0.0
        %2277 = vmatpush1.msra.mxu0 %v2256
        %2278 = vmatprep.subr.mxu0 0.0
        %2279 = vmatpush1.msra.mxu0 %v2257
        %2280 = vmatprep.subr.mxu0 0.0
        %2281 = vmatpush1.msra.mxu0 %v2258
        %2282 = vmatprep.subr.mxu0 0.0
        %2283 = vmatpush1.msra.mxu0 %v2259
        %2284 = vmatprep.subr.mxu0 0.0
        %2285 = vmatpush1.msra.mxu0 %v2260
        %2286 = vmatprep.subr.mxu0 0.0
        %2287 = vmatpush1.msra.mxu0 %v2261
        %2288 = vmatprep.subr.mxu0 0.0
        %2289 = vmatpush1.msra.mxu0 %v2262
        %2290 = vmatprep.subr.mxu0 0.0
        %2291 = vmatpush1.msra.mxu0 %v2263
        %2292 = vmatprep.subr.mxu0 0.0
        %2293 = vmatpush1.msra.mxu0 %v2264
        %2294 = vmatprep.subr.mxu0 0.0
        %2295 = vmatpush1.msra.mxu0 %v2265
        %2296 = vmatprep.subr.mxu0 0.0
        %2297 = vmatpush1.msra.mxu0 %v2266
        %2298 = vmatprep.subr.mxu0 0.0
        %2299 = vmatpush1.msra.mxu0 %v2267
        %2300 = vmatprep.subr.mxu0 0.0
        %2301 = vmatpush1.msra.mxu0 0.0
        %2302 = vmatprep.subr.mxu0 0.0
        %2303 = vmatpush1.msra.mxu0 0.0
        %2304 = vmatprep.subr.mxu0 0.0
        %2305 = vmatpush1.msra.mxu0 0.0
        %2306 = vmatprep.subr.mxu0 0.0
        %2307 = vmatpush1.msra.mxu0 0.0
        %2308 = vmatprep.subr.mxu0 0.0
        %2309 = vmatpush1.msra.mxu0 0.0
        %2310 = vmatprep.subr.mxu0 0.0
        %2311 = vmatpush1.msra.mxu0 0.0
        %2312 = vmatprep.subr.mxu0 0.0
        %2313 = vmatpush1.msra.mxu0 0.0
        %2314 = vmatprep.subr.mxu0 0.0
        %2315 = vmatpush1.msra.mxu0 0.0
        %2316 = vmatprep.subr.mxu0 0.0
        %2317 = vmatpush1.msra.mxu0 0.0
        %2318 = vmatprep.subr.mxu0 0.0
        %2319 = vmatpush1.msra.mxu0 0.0
        %2320 = vmatprep.subr.mxu0 0.0
        %2321 = vmatpush1.msra.mxu0 0.0
        %2322 = vmatprep.subr.mxu0 0.0
        %2323 = vmatpush1.msra.mxu0 0.0
        %2324 = vmatprep.subr.mxu0 0.0
        %2325 = vmatpush1.msra.mxu0 0.0
        %2326 = vmatprep.subr.mxu0 0.0
        %2327 = vmatpush1.msra.mxu0 0.0
        %2328 = vmatprep.subr.mxu0 0.0
        %2329 = vmatpush1.msra.mxu0 0.0
        %2330 = vmatprep.subr.mxu0 0.0
        %2331 = vmatpush1.msra.mxu0 0.0
        %2332 = vmatprep.mubr.f32.mxu0 0.0
        %2333 = vmatmul.mubr.f32.gmra.mrb[0].mxu0 %v1953
        %v2334 = vpop.f32.mrb[0].mxu0
        %v2335 = vadd.f32 0.0, %v2334
        %v2336 = vpop.f32.mrb[0].mxu0
        %2337 = vdwg.mxu0
        %v2339 = vsel %vm377, %v310, 0
        %2341 = vmatprep.subr.mxu0 0.0
        %2342 = vmatpush1.msra.mxu0 %v2335
        %2343 = vmatprep.subr.mxu0 0.0
        %2344 = vmatpush1.msra.mxu0 0.0
        %2345 = vmatprep.subr.mxu0 0.0
        %2346 = vmatpush1.msra.mxu0 0.0
        %2347 = vmatprep.subr.mxu0 0.0
        %2348 = vmatpush1.msra.mxu0 0.0
        %2349 = vmatprep.subr.mxu0 0.0
        %2350 = vmatpush1.msra.mxu0 0.0
        %2351 = vmatprep.subr.mxu0 0.0
        %2352 = vmatpush1.msra.mxu0 0.0
        %2353 = vmatprep.subr.mxu0 0.0
        %2354 = vmatpush1.msra.mxu0 0.0
        %2355 = vmatprep.subr.mxu0 0.0
        %2356 = vmatpush1.msra.mxu0 0.0
        %2357 = vmatprep.subr.mxu0 0.0
        %2358 = vmatpush1.msra.mxu0 0.0
        %2359 = vmatprep.subr.mxu0 0.0
        %2360 = vmatpush1.msra.mxu0 0.0
        %2361 = vmatprep.subr.mxu0 0.0
        %2362 = vmatpush1.msra.mxu0 0.0
        %2363 = vmatprep.subr.mxu0 0.0
        %2364 = vmatpush1.msra.mxu0 0.0
        %2365 = vmatprep.subr.mxu0 0.0
        %2366 = vmatpush1.msra.mxu0 0.0
        %2367 = vmatprep.subr.mxu0 0.0
        %2368 = vmatpush1.msra.mxu0 0.0
        %2369 = vmatprep.subr.mxu0 0.0
        %2370 = vmatpush1.msra.mxu0 0.0
        %2371 = vmatprep.subr.mxu0 0.0
        %2372 = vmatpush1.msra.mxu0 0.0
        %2373 = vmatprep.subr.mxu0 0.0
        %2374 = vmatpush1.msra.mxu0 0.0
        %2375 = vmatprep.subr.mxu0 0.0
        %2376 = vmatpush1.msra.mxu0 0.0
        %2377 = vmatprep.subr.mxu0 0.0
        %2378 = vmatpush1.msra.mxu0 0.0
        %2379 = vmatprep.subr.mxu0 0.0
        %2380 = vmatpush1.msra.mxu0 0.0
        %2381 = vmatprep.subr.mxu0 0.0
        %2382 = vmatpush1.msra.mxu0 0.0
        %2383 = vmatprep.subr.mxu0 0.0
        %2384 = vmatpush1.msra.mxu0 0.0
        %2385 = vmatprep.subr.mxu0 0.0
        %2386 = vmatpush1.msra.mxu0 0.0
        %2387 = vmatprep.subr.mxu0 0.0
        %2388 = vmatpush1.msra.mxu0 0.0
        %2389 = vmatprep.subr.mxu0 0.0
        %2390 = vmatpush1.msra.mxu0 0.0
        %2391 = vmatprep.subr.mxu0 0.0
        %2392 = vmatpush1.msra.mxu0 0.0
        %2393 = vmatprep.subr.mxu0 0.0
        %2394 = vmatpush1.msra.mxu0 0.0
        %2395 = vmatprep.subr.mxu0 0.0
        %2396 = vmatpush1.msra.mxu0 0.0
        %2397 = vmatprep.subr.mxu0 0.0
        %2398 = vmatpush1.msra.mxu0 0.0
        %2399 = vmatprep.subr.mxu0 0.0
        %2400 = vmatpush1.msra.mxu0 0.0
        %2401 = vmatprep.subr.mxu0 0.0
        %2402 = vmatpush1.msra.mxu0 0.0
        %2403 = vmatprep.subr.mxu0 0.0
        %2404 = vmatpush1.msra.mxu0 0.0
        %2405 = vmatprep.mubr.f32.mxu0 0.0
        %2406 = vmatmul.mubr.f32.gmra.mrb[0].mxu0 %v2339
        %v2407 = vpop.f32.mrb[0].mxu0
        %v2408 = vadd.f32 0.0, %v2407
        %v2409 = vpop.f32.mrb[0].mxu0
        %2410 = vdwg.mxu0
        %v2411 = vadd.f32 %v2216, %v2408
        %2413 = vset.pattern.permute.xlu0 0
        %2414 = vperm.xlu0 %2413, %v314
        %v2415 = vpop.permute.xlu0 %2414
        %v2417 = vadd.f32 %v2411, %v2415
        %v2418 = vmax.f32 %v501, 0.0
        %2419 = vmatprep.subr.mxu0 0.0
        %2420 = vmatpush1.msra.mxu0 %v592
        %2421 = vmatprep.subr.mxu0 0.0
        %2422 = vmatpush1.msra.mxu0 %v593
        %2423 = vmatprep.subr.mxu0 0.0
        %2424 = vmatpush1.msra.mxu0 %v594
        %2425 = vmatprep.subr.mxu0 0.0
        %2426 = vmatpush1.msra.mxu0 %v595
        %2427 = vmatprep.subr.mxu0 0.0
        %2428 = vmatpush1.msra.mxu0 %v596
        %2429 = vmatprep.subr.mxu0 0.0
        %2430 = vmatpush1.msra.mxu0 %v597
        %2431 = vmatprep.subr.mxu0 0.0
        %2432 = vmatpush1.msra.mxu0 %v598
        %2433 = vmatprep.subr.mxu0 0.0
        %2434 = vmatpush1.msra.mxu0 %v599
        %2435 = vmatprep.subr.mxu0 0.0
        %2436 = vmatpush1.msra.mxu0 %v600
        %2437 = vmatprep.subr.mxu0 0.0
        %2438 = vmatpush1.msra.mxu0 %v601
        %2439 = vmatprep.subr.mxu0 0.0
        %2440 = vmatpush1.msra.mxu0 %v602
        %2441 = vmatprep.subr.mxu0 0.0
        %2442 = vmatpush1.msra.mxu0 %v603
        %2443 = vmatprep.subr.mxu0 0.0
        %2444 = vmatpush1.msra.mxu0 %v604
        %2445 = vmatprep.subr.mxu0 0.0
        %2446 = vmatpush1.msra.mxu0 %v605
        %2447 = vmatprep.subr.mxu0 0.0
        %2448 = vmatpush1.msra.mxu0 %v606
        %2449 = vmatprep.subr.mxu0 0.0
        %2450 = vmatpush1.msra.mxu0 %v607
        %2451 = vmatprep.subr.mxu0 0.0
        %2452 = vmatpush1.msra.mxu0 0.0
        %2453 = vmatprep.subr.mxu0 0.0
        %2454 = vmatpush1.msra.mxu0 0.0
        %2455 = vmatprep.subr.mxu0 0.0
        %2456 = vmatpush1.msra.mxu0 0.0
        %2457 = vmatprep.subr.mxu0 0.0
        %2458 = vmatpush1.msra.mxu0 0.0
        %2459 = vmatprep.subr.mxu0 0.0
        %2460 = vmatpush1.msra.mxu0 0.0
        %2461 = vmatprep.subr.mxu0 0.0
        %2462 = vmatpush1.msra.mxu0 0.0
        %2463 = vmatprep.subr.mxu0 0.0
        %2464 = vmatpush1.msra.mxu0 0.0
        %2465 = vmatprep.subr.mxu0 0.0
        %2466 = vmatpush1.msra.mxu0 0.0
        %2467 = vmatprep.subr.mxu0 0.0
        %2468 = vmatpush1.msra.mxu0 0.0
        %2469 = vmatprep.subr.mxu0 0.0
        %2470 = vmatpush1.msra.mxu0 0.0
        %2471 = vmatprep.subr.mxu0 0.0
        %2472 = vmatpush1.msra.mxu0 0.0
        %2473 = vmatprep.subr.mxu0 0.0
        %2474 = vmatpush1.msra.mxu0 0.0
        %2475 = vmatprep.subr.mxu0 0.0
        %2476 = vmatpush1.msra.mxu0 0.0
        %2477 = vmatprep.subr.mxu0 0.0
        %2478 = vmatpush1.msra.mxu0 0.0
        %2479 = vmatprep.subr.mxu0 0.0
        %2480 = vmatpush1.msra.mxu0 0.0
        %2481 = vmatprep.subr.mxu0 0.0
        %2482 = vmatpush1.msra.mxu0 0.0
        %2483 = vmatprep.mubr.f32.mxu0 0.0
        %2484 = vmatmul.mubr.f32.gmra.mrb[0].mxu0 %v2418
        %v2485 = vpop.f32.mrb[0].mxu0
        %v2486 = vadd.f32 0.0, %v2485
        %v2487 = vpop.f32.mrb[0].mxu0
        %2488 = vdwg.mxu0
        %v2489 = vmax.f32 %v2486, %v2418
        %2490 = vmatprep.subr.mxu0 0.0
        %2491 = vmatpush1.msra.mxu0 %v857
        %2492 = vmatprep.subr.mxu0 0.0
        %2493 = vmatpush1.msra.mxu0 %v858
        %2494 = vmatprep.subr.mxu0 0.0
        %2495 = vmatpush1.msra.mxu0 %v859
        %2496 = vmatprep.subr.mxu0 0.0
        %2497 = vmatpush1.msra.mxu0 %v860
        %2498 = vmatprep.subr.mxu0 0.0
        %2499 = vmatpush1.msra.mxu0 %v861
        %2500 = vmatprep.subr.mxu0 0.0
        %2501 = vmatpush1.msra.mxu0 %v862
        %2502 = vmatprep.subr.mxu0 0.0
        %2503 = vmatpush1.msra.mxu0 %v863
        %2504 = vmatprep.subr.mxu0 0.0
        %2505 = vmatpush1.msra.mxu0 %v864
        %2506 = vmatprep.subr.mxu0 0.0
        %2507 = vmatpush1.msra.mxu0 %v865
        %2508 = vmatprep.subr.mxu0 0.0
        %2509 = vmatpush1.msra.mxu0 %v866
        %2510 = vmatprep.subr.mxu0 0.0
        %2511 = vmatpush1.msra.mxu0 %v867
        %2512 = vmatprep.subr.mxu0 0.0
        %2513 = vmatpush1.msra.mxu0 %v868
        %2514 = vmatprep.subr.mxu0 0.0
        %2515 = vmatpush1.msra.mxu0 %v869
        %2516 = vmatprep.subr.mxu0 0.0
        %2517 = vmatpush1.msra.mxu0 %v870
        %2518 = vmatprep.subr.mxu0 0.0
        %2519 = vmatpush1.msra.mxu0 %v871
        %2520 = vmatprep.subr.mxu0 0.0
        %2521 = vmatpush1.msra.mxu0 %v872
        %2522 = vmatprep.subr.mxu0 0.0
        %2523 = vmatpush1.msra.mxu0 0.0
        %2524 = vmatprep.subr.mxu0 0.0
        %2525 = vmatpush1.msra.mxu0 0.0
        %2526 = vmatprep.subr.mxu0 0.0
        %2527 = vmatpush1.msra.mxu0 0.0
        %2528 = vmatprep.subr.mxu0 0.0
        %2529 = vmatpush1.msra.mxu0 0.0
        %2530 = vmatprep.subr.mxu0 0.0
        %2531 = vmatpush1.msra.mxu0 0.0
        %2532 = vmatprep.subr.mxu0 0.0
        %2533 = vmatpush1.msra.mxu0 0.0
        %2534 = vmatprep.subr.mxu0 0.0
        %2535 = vmatpush1.msra.mxu0 0.0
        %2536 = vmatprep.subr.mxu0 0.0
        %2537 = vmatpush1.msra.mxu0 0.0
        %2538 = vmatprep.subr.mxu0 0.0
        %2539 = vmatpush1.msra.mxu0 0.0
        %2540 = vmatprep.subr.mxu0 0.0
        %2541 = vmatpush1.msra.mxu0 0.0
        %2542 = vmatprep.subr.mxu0 0.0
        %2543 = vmatpush1.msra.mxu0 0.0
        %2544 = vmatprep.subr.mxu0 0.0
        %2545 = vmatpush1.msra.mxu0 0.0
        %2546 = vmatprep.subr.mxu0 0.0
        %2547 = vmatpush1.msra.mxu0 0.0
        %2548 = vmatprep.subr.mxu0 0.0
        %2549 = vmatpush1.msra.mxu0 0.0
        %2550 = vmatprep.subr.mxu0 0.0
        %2551 = vmatpush1.msra.mxu0 0.0
        %2552 = vmatprep.subr.mxu0 0.0
        %2553 = vmatpush1.msra.mxu0 0.0
        %2554 = vmatprep.mubr.f32.mxu0 0.0
        %2555 = vmatmul.mubr.f32.gmra.mrb[0].mxu0 %v2418
        %v2556 = vpop.f32.mrb[0].mxu0
        %v2557 = vadd.f32 0.0, %v2556
        %v2558 = vpop.f32.mrb[0].mxu0
        %2559 = vdwg.mxu0
        %v2560 = vmax.f32 %v2489, %v2557
        %2562 = vset.pattern.permute.xlu0 0
        %2563 = vperm.xlu0 %2562, %v315
        %v2564 = vpop.permute.xlu0 %2563
        %v2566 = vmul.f32 %v2560, %v2564
        %2568 = vset.pattern.permute.xlu0 0
        %2569 = vperm.xlu0 %2568, %v316
        %v2570 = vpop.permute.xlu0 %2569
        %v2572 = vadd.f32 %v2566, %v2570
        %v2573 = vadd.f32 %v1022, %v511
        %v2574 = vadd.f32 %v1487, %v516
        %v2575 = vadd.f32 %v1952, %v521
        %v2576 = vadd.f32 %v2417, %v526
        %v2577 = vadd.f32 %v2572, %v531
        %v2578 = vadd.f32 %v506, %v536
        %v2579 = vmax.f32 %v2573, 0.0
        %v2580 = vmax.f32 %v2574, 0.0
        %v2581 = vmax.f32 %v2575, 0.0
        %v2582 = vmax.f32 %v2576, 0.0
        %v2583 = vmax.f32 %v2577, 0.0
        %v2584 = vmax.f32 %v2578, 0.0
        %2585 = vst [vmem:[%s269] sm:$0xff] %v2579
        %2586 = vst [vmem:[%s269 + $0x8] sm:$0xff] %v2580
        %2587 = vst [vmem:[%s269 + $0x10] sm:$0xff] %v2581
        %2588 = vst [vmem:[%s269 + $0x18] sm:$0xff] %v2582
        %2589 = vst [vmem:[%s269 + $0x20] sm:$0xff] %v2583
        %2590 = vst [vmem:[%s269 + $0x28] sm:$0xff] %v2584
        %s2591 = sand.u32 %s181, 1
        %s2592 = scalar_lea.sflag [#allocation3], %s2591
        %s2593 = sand.u32 %s181, 1
        %s2594 = smul.addr %s2593, 48
        %s2595 = scalar_lea.vmem [#allocation2], %s2594
        // Predicated region
        $region49: #{tpu_custom_call.1} parent=47 // pred_check
          %p2596 = pneg %p191
        $region50: #{tpu_custom_call.1} parent=47 // pred_check_branch
          %2598 = sbr.rel (%p2596) target = $region52
        $region51: #{tpu_custom_call.1} parent=47 // pred_region
          %s2600 = ssub.s32 768, 768
          %2601 = vsyncadd %s2592, %s2600
          %s2602 = smul.addr %s21, 6
          %s2603 = smul.addr %s2602, 128
          %s2604 = scalar_lea.hbm %s7, %s2603
          %s2605 = sshll.u32 %s2595, 4
          %s2606 = int_to_ptr.vmem [resolvable:$true] %s2605
          %2611 = dma.vmem_to_hbm [thread:$0]  %s2606, 768, %s2604, %s2592, 128, 128, 8
        $region52: #{tpu_custom_call.1} parent=47 // pred_fallthru
          _
      $region48: #{tpu_custom_call.1} parent=5 // pred_fallthru
        _
      %p2612 = scmp.le.s32.totalorder 2, %s16
      // Predicated region
      $region53: #{tpu_custom_call.1} parent=5 // pred_check
        %p2613 = pneg %p2612
      $region54: #{tpu_custom_call.1} parent=5 // pred_check_branch
        %2615 = sbr.rel (%p2613) target = $region56
      $region55: #{tpu_custom_call.1} parent=5 // pred_region
        %s2616 = ssub.s32 %s16, 2
        // Predicated region
        $region57: #{tpu_custom_call.1} parent=55 // pred_check
          %p2617 = pneg %p197
        $region58: #{tpu_custom_call.1} parent=55 // pred_check_branch
          %2619 = sbr.rel (%p2617) target = $region60
        $region59: #{tpu_custom_call.1} parent=55 // pred_region
          %s2620 = sand.u32 %s182, 1
          %s2621 = scalar_lea.sflag [#allocation3], %s2620
          %s2622 = sand.u32 %s182, 1
          %s2623 = smul.addr %s2622, 48
          %s2624 = scalar_lea.vmem [#allocation2], %s2623
          %2625 = dma.done %s2621, 768
        $region60: #{tpu_custom_call.1} parent=55 // pred_fallthru
          _
      $region56: #{tpu_custom_call.1} parent=5 // pred_fallthru
        _
    $region6: #{tpu_custom_call.1} parent=1 // loop_footer
      %s20 = sadd.s32 1, %s16
    $region7: #{tpu_custom_call.1} parent=1 // loop_footer_branch
      %15 = sbr.rel target = $region3
    $region8: #{tpu_custom_call.1} parent=1 // loop_exit
      _
    %2626 = vsyncpa [#allocation3], 1
    %s2627 = scalar_lea.sflag [#allocation3], 1
    %2628 = vsyncpa %s2627, 1

</llo_original>
